<compile_context>
chip_gen: v6e
topology: v6e:2x2x1
jax: 0.10.0
libtpu: 0.0.40
codegen_flags: <defaults>
</compile_context>

<pallas_src>
import functools

import jax
import jax.numpy as jnp
from jax.experimental import pallas as pl
from jax.experimental.pallas import tpu as pltpu

C_OUT, KH, KW = 4, 4, 4
LANE_TILE = 128          # images per grid step (batch mapped to TPU lanes)


def _make_weight():
    # Deterministic weights, exactly as in the PyTorch script (reference only;
    # the kernel bakes the +/-1 structure in directly).
    filter_vals = jnp.array([[-1., -1., 1., 1.]] * 4, dtype=jnp.float32)  # (4, 4)
    f1 = filter_vals
    f2 = -f1
    f3 = f1.T
    f4 = -f3
    return jnp.stack([f1, f2, f3, f4], axis=0)  # (C_OUT, KH, KW); C_in == 1 implicit


def _conv_relu_pool_kernel(x_ref, conv_ref, relu_ref, poolw_ref, *, HO, WO, HP):
    # x_ref:     (H, W, B)            one lane-tile of images, batch on lanes
    # conv_ref:  (C_OUT, HO, WO, B)
    # relu_ref:  (C_OUT, HO, WO, B)
    # poolw_ref: (C_OUT, HP, WO-1, B) pooled rows; even columns selected in wrapper
    xv = x_ref[...]                                           # (H, W, B) f32

    # 4-row running sum (leading-dim slices: free register selection).
    rs = xv[0:HO] + xv[1:HO + 1] + xv[2:HO + 2] + xv[3:HO + 3]          # (HO, W, B)
    # 4-column running sum (sublane-dim slices).
    cs = xv[:, 0:WO] + xv[:, 1:WO + 1] + xv[:, 2:WO + 2] + xv[:, 3:WO + 3]  # (H, WO, B)

    # filter_1 is rank-1: ones(4) x [-1,-1,1,1]  -> vertical sum then +/- horizontal pass
    c0 = -rs[:, 0:WO] - rs[:, 1:WO + 1] + rs[:, 2:WO + 2] + rs[:, 3:WO + 3]  # (HO, WO, B)
    # filter_3 = filter_1.T: horizontal sum then +/- vertical pass
    c2 = -cs[0:HO] - cs[1:HO + 1] + cs[2:HO + 2] + cs[3:HO + 3]              # (HO, WO, B)

    channels = (c0, -c0, c2, -c2)     # filter_2 = -filter_1, filter_4 = -filter_3
    for oc in range(C_OUT):
        c = channels[oc]
        conv_ref[oc] = c                                       # one wide store / channel
        r = jnp.maximum(c, 0.0)                                # ReLU (VPU)
        relu_ref[oc] = r

        # 2x2 / stride-2 max pool (floor mode), pure VPU:
        #   1) pair adjacent rows (leading dim -> static slices + concat, cheap)
        rows = [jnp.maximum(r[2 * ph:2 * ph + 1], r[2 * ph + 1:2 * ph + 2])
                for ph in range(HP)]                           # HP x (1, WO, B)
        vm = jnp.concatenate(rows, axis=0)                     # (HP, WO, B)
        #   2) pair adjacent columns (sublane dim); even columns picked in wrapper
        poolw_ref[oc] = jnp.maximum(vm[:, 0:WO - 1], vm[:, 1:WO])   # (HP, WO-1, B)


@jax.jit
def net_forward(x):
    """x: (N, 1, H, W) float32 (NCHW). Returns (conv, relu, pooled) in NCHW."""
    N, Cin, H, W = x.shape
    assert Cin == 1
    HO, WO = H - KH + 1, W - KW + 1
    HP, WP = HO // 2, WO // 2

    # Pixel-major, batch-minor layout: batch on the lane axis.
    x_t = jnp.transpose(x[:, 0], (1, 2, 0)).astype(jnp.float32)       # (H, W, N)

    if N <= LANE_TILE:
        b_tile, NP = N, N                     # single block, full-dim lane block
    else:
        b_tile = LANE_TILE
        NP = pl.cdiv(N, b_tile) * b_tile      # pad tail block with zero images
        x_t = jnp.pad(x_t, ((0, 0), (0, 0), (0, NP - N)))

    kern = functools.partial(_conv_relu_pool_kernel, HO=HO, WO=WO, HP=HP)

    out_shape = (
        jax.ShapeDtypeStruct((C_OUT, HO, WO, NP), jnp.float32),
        jax.ShapeDtypeStruct((C_OUT, HO, WO, NP), jnp.float32),
        jax.ShapeDtypeStruct((C_OUT, HP, WO - 1, NP), jnp.float32),
    )
    flops = 2 * N * C_OUT * HO * WO * KH * KW
    bytes_accessed = 4 * (N * H * W + 2 * N * C_OUT * HO * WO + N * C_OUT * HP * WP)

    conv_t, relu_t, poolw_t = pl.pallas_call(
        kern,
        grid=(NP // b_tile,),
        in_specs=[pl.BlockSpec((H, W, b_tile), lambda n: (0, 0, n))],
        out_specs=(
            pl.BlockSpec((C_OUT, HO, WO, b_tile), lambda n: (0, 0, 0, n)),
            pl.BlockSpec((C_OUT, HO, WO, b_tile), lambda n: (0, 0, 0, n)),
            pl.BlockSpec((C_OUT, HP, WO - 1, b_tile), lambda n: (0, 0, 0, n)),
        ),
        out_shape=out_shape,
        compiler_params=pltpu.CompilerParams(dimension_semantics=("parallel",)),
        cost_estimate=pl.CostEstimate(flops=flops, transcendentals=0,
                                      bytes_accessed=bytes_accessed),
    )(x_t)

    # Back to NCHW; pick even columns of the pooled-row slab (cheap XLA ops on HBM).
    conv = jnp.transpose(conv_t[..., :N], (3, 0, 1, 2))                 # (N, 4, HO, WO)
    relu = jnp.transpose(relu_t[..., :N], (3, 0, 1, 2))                 # (N, 4, HO, WO)
    pooled = jnp.transpose(poolw_t[:, :, 0:2 * WP:2, :N], (3, 0, 1, 2)) # (N, 4, HP, WP)
    return conv, relu, pooled


def _reference(x):
    # Pure-JAX reference matching the PyTorch module semantics.
    w4d = _make_weight()[:, None, :, :]  # (O, I=1, KH, KW)
    conv = jax.lax.conv_general_dilated(
        x, w4d, window_strides=(1, 1), padding="VALID",
        dimension_numbers=("NCHW", "OIHW", "NCHW"))
    relu = jnp.maximum(conv, 0.0)
    pooled = jax.lax.reduce_window(
        relu, -jnp.inf, jax.lax.max,
        window_dimensions=(1, 1, 2, 2), window_strides=(1, 1, 2, 2), padding="VALID")
    return conv, relu, pooled


if __name__ == "__main__":
    key = jax.random.PRNGKey(0)
    x = jax.random.normal(key, (2, 1, 16, 16), dtype=jnp.float32)

    conv, relu, pooled = net_forward(x)
    jax.block_until_ready((conv, relu, pooled))

    conv_r, relu_r, pooled_r = _reference(x)
    assert conv.shape == (2, 4, 13, 13) and relu.shape == (2, 4, 13, 13)
    assert pooled.shape == (2, 4, 6, 6)
    assert jnp.allclose(conv, conv_r, atol=1e-4, rtol=1e-4)
    assert jnp.allclose(relu, relu_r, atol=1e-4, rtol=1e-4)
    assert jnp.allclose(pooled, pooled_r, atol=1e-4, rtol=1e-4)

    print("KERNEL_OK")
</pallas_src>

<mosaic_0001>
module attributes {stable_mosaic.version = 11 : i64} {
  func.func @_conv_relu_pool_kernel(%arg0: i32, %arg1: memref<16x16x2xf32, #tpu.memory_space<vmem>>, %arg2: memref<4x13x13x2xf32, #tpu.memory_space<vmem>>, %arg3: memref<4x13x13x2xf32, #tpu.memory_space<vmem>>, %arg4: memref<4x6x12x2xf32, #tpu.memory_space<vmem>>) attributes {dimension_semantics = [#tpu.dimension_semantics<parallel>], iteration_bounds = array<i64: 1>, scalar_prefetch = 0 : i64, scratch_operands = 0 : i64, tpu.core_type = #tpu.core_type<tc>, window_params = [{transform_indices = @transform_0, window_bounds = array<i64: 16, 16, 2>}, {transform_indices = @transform_1, window_bounds = array<i64: 4, 13, 13, 2>}, {transform_indices = @transform_2, window_bounds = array<i64: 4, 13, 13, 2>}, {transform_indices = @transform_3, window_bounds = array<i64: 4, 6, 12, 2>}]} {
    %c0 = arith.constant 0 : index
    %c0_0 = arith.constant 0 : index
    %c0_1 = arith.constant 0 : index
    %0 = vector.load %arg1[%c0, %c0_0, %c0_1] : memref<16x16x2xf32, #tpu.memory_space<vmem>>, vector<16x16x2xf32>
    %1 = vector.extract_strided_slice %0 {offsets = [0, 0, 0], sizes = [13, 16, 2], strides = [1, 1, 1]} : vector<16x16x2xf32> to vector<13x16x2xf32>
    %2 = vector.extract_strided_slice %0 {offsets = [1, 0, 0], sizes = [13, 16, 2], strides = [1, 1, 1]} : vector<16x16x2xf32> to vector<13x16x2xf32>
    %3 = arith.addf %1, %2 : vector<13x16x2xf32>
    %4 = vector.extract_strided_slice %0 {offsets = [2, 0, 0], sizes = [13, 16, 2], strides = [1, 1, 1]} : vector<16x16x2xf32> to vector<13x16x2xf32>
    %5 = arith.addf %3, %4 : vector<13x16x2xf32>
    %6 = vector.extract_strided_slice %0 {offsets = [3, 0, 0], sizes = [13, 16, 2], strides = [1, 1, 1]} : vector<16x16x2xf32> to vector<13x16x2xf32>
    %7 = arith.addf %5, %6 : vector<13x16x2xf32>
    %8 = vector.extract_strided_slice %0 {offsets = [0, 0, 0], sizes = [16, 13, 2], strides = [1, 1, 1]} : vector<16x16x2xf32> to vector<16x13x2xf32>
    %9 = vector.extract_strided_slice %0 {offsets = [0, 1, 0], sizes = [16, 13, 2], strides = [1, 1, 1]} : vector<16x16x2xf32> to vector<16x13x2xf32>
    %10 = arith.addf %8, %9 : vector<16x13x2xf32>
    %11 = vector.extract_strided_slice %0 {offsets = [0, 2, 0], sizes = [16, 13, 2], strides = [1, 1, 1]} : vector<16x16x2xf32> to vector<16x13x2xf32>
    %12 = arith.addf %10, %11 : vector<16x13x2xf32>
    %13 = vector.extract_strided_slice %0 {offsets = [0, 3, 0], sizes = [16, 13, 2], strides = [1, 1, 1]} : vector<16x16x2xf32> to vector<16x13x2xf32>
    %14 = arith.addf %12, %13 : vector<16x13x2xf32>
    %15 = vector.extract_strided_slice %7 {offsets = [0, 0, 0], sizes = [13, 13, 2], strides = [1, 1, 1]} : vector<13x16x2xf32> to vector<13x13x2xf32>
    %cst = arith.constant 0.000000e+00 : f32
    %16 = vector.broadcast %cst : f32 to vector<13x13x2xf32>
    %17 = arith.subf %16, %15 : vector<13x13x2xf32>
    %18 = vector.extract_strided_slice %7 {offsets = [0, 1, 0], sizes = [13, 13, 2], strides = [1, 1, 1]} : vector<13x16x2xf32> to vector<13x13x2xf32>
    %19 = arith.subf %17, %18 : vector<13x13x2xf32>
    %20 = vector.extract_strided_slice %7 {offsets = [0, 2, 0], sizes = [13, 13, 2], strides = [1, 1, 1]} : vector<13x16x2xf32> to vector<13x13x2xf32>
    %21 = arith.addf %19, %20 : vector<13x13x2xf32>
    %22 = vector.extract_strided_slice %7 {offsets = [0, 3, 0], sizes = [13, 13, 2], strides = [1, 1, 1]} : vector<13x16x2xf32> to vector<13x13x2xf32>
    %23 = arith.addf %21, %22 : vector<13x13x2xf32>
    %24 = vector.extract_strided_slice %14 {offsets = [0, 0, 0], sizes = [13, 13, 2], strides = [1, 1, 1]} : vector<16x13x2xf32> to vector<13x13x2xf32>
    %cst_2 = arith.constant 0.000000e+00 : f32
    %25 = vector.broadcast %cst_2 : f32 to vector<13x13x2xf32>
    %26 = arith.subf %25, %24 : vector<13x13x2xf32>
    %27 = vector.extract_strided_slice %14 {offsets = [1, 0, 0], sizes = [13, 13, 2], strides = [1, 1, 1]} : vector<16x13x2xf32> to vector<13x13x2xf32>
    %28 = arith.subf %26, %27 : vector<13x13x2xf32>
    %29 = vector.extract_strided_slice %14 {offsets = [2, 0, 0], sizes = [13, 13, 2], strides = [1, 1, 1]} : vector<16x13x2xf32> to vector<13x13x2xf32>
    %30 = arith.addf %28, %29 : vector<13x13x2xf32>
    %31 = vector.extract_strided_slice %14 {offsets = [3, 0, 0], sizes = [13, 13, 2], strides = [1, 1, 1]} : vector<16x13x2xf32> to vector<13x13x2xf32>
    %32 = arith.addf %30, %31 : vector<13x13x2xf32>
    %cst_3 = arith.constant 0.000000e+00 : f32
    %33 = vector.broadcast %cst_3 : f32 to vector<13x13x2xf32>
    %34 = arith.subf %33, %23 : vector<13x13x2xf32>
    %cst_4 = arith.constant 0.000000e+00 : f32
    %35 = vector.broadcast %cst_4 : f32 to vector<13x13x2xf32>
    %36 = arith.subf %35, %32 : vector<13x13x2xf32>
    %c0_5 = arith.constant 0 : index
    %c0_6 = arith.constant 0 : index
    %c0_7 = arith.constant 0 : index
    %c0_8 = arith.constant 0 : index
    %37 = vector.load %arg2[%c0_5, %c0_6, %c0_7, %c0_8] : memref<4x13x13x2xf32, #tpu.memory_space<vmem>>, vector<1x13x13x2xf32>
    %38 = vector.shape_cast %37 : vector<1x13x13x2xf32> to vector<13x13x2xf32>
    %39 = vector.shape_cast %23 : vector<13x13x2xf32> to vector<1x13x13x2xf32>
    tpu.vector_store %arg2[%c0_5, %c0_6, %c0_7, %c0_8], %39 {strides = array<i32>} : memref<4x13x13x2xf32, #tpu.memory_space<vmem>>, vector<1x13x13x2xf32>,
    %cst_9 = arith.constant 0.000000e+00 : f32
    %40 = vector.broadcast %cst_9 : f32 to vector<13x13x2xf32>
    %41 = arith.maximumf %23, %40 : vector<13x13x2xf32>
    %c0_10 = arith.constant 0 : index
    %c0_11 = arith.constant 0 : index
    %c0_12 = arith.constant 0 : index
    %c0_13 = arith.constant 0 : index
    %42 = vector.load %arg3[%c0_10, %c0_11, %c0_12, %c0_13] : memref<4x13x13x2xf32, #tpu.memory_space<vmem>>, vector<1x13x13x2xf32>
    %43 = vector.shape_cast %42 : vector<1x13x13x2xf32> to vector<13x13x2xf32>
    %44 = vector.shape_cast %41 : vector<13x13x2xf32> to vector<1x13x13x2xf32>
    tpu.vector_store %arg3[%c0_10, %c0_11, %c0_12, %c0_13], %44 {strides = array<i32>} : memref<4x13x13x2xf32, #tpu.memory_space<vmem>>, vector<1x13x13x2xf32>,
    %45 = vector.extract_strided_slice %41 {offsets = [0, 0, 0], sizes = [1, 13, 2], strides = [1, 1, 1]} : vector<13x13x2xf32> to vector<1x13x2xf32>
    %46 = vector.extract_strided_slice %41 {offsets = [1, 0, 0], sizes = [1, 13, 2], strides = [1, 1, 1]} : vector<13x13x2xf32> to vector<1x13x2xf32>
    %47 = arith.maximumf %45, %46 : vector<1x13x2xf32>
    %48 = vector.extract_strided_slice %41 {offsets = [2, 0, 0], sizes = [1, 13, 2], strides = [1, 1, 1]} : vector<13x13x2xf32> to vector<1x13x2xf32>
    %49 = vector.extract_strided_slice %41 {offsets = [3, 0, 0], sizes = [1, 13, 2], strides = [1, 1, 1]} : vector<13x13x2xf32> to vector<1x13x2xf32>
    %50 = arith.maximumf %48, %49 : vector<1x13x2xf32>
    %51 = vector.extract_strided_slice %41 {offsets = [4, 0, 0], sizes = [1, 13, 2], strides = [1, 1, 1]} : vector<13x13x2xf32> to vector<1x13x2xf32>
    %52 = vector.extract_strided_slice %41 {offsets = [5, 0, 0], sizes = [1, 13, 2], strides = [1, 1, 1]} : vector<13x13x2xf32> to vector<1x13x2xf32>
    %53 = arith.maximumf %51, %52 : vector<1x13x2xf32>
    %54 = vector.extract_strided_slice %41 {offsets = [6, 0, 0], sizes = [1, 13, 2], strides = [1, 1, 1]} : vector<13x13x2xf32> to vector<1x13x2xf32>
    %55 = vector.extract_strided_slice %41 {offsets = [7, 0, 0], sizes = [1, 13, 2], strides = [1, 1, 1]} : vector<13x13x2xf32> to vector<1x13x2xf32>
    %56 = arith.maximumf %54, %55 : vector<1x13x2xf32>
    %57 = vector.extract_strided_slice %41 {offsets = [8, 0, 0], sizes = [1, 13, 2], strides = [1, 1, 1]} : vector<13x13x2xf32> to vector<1x13x2xf32>
    %58 = vector.extract_strided_slice %41 {offsets = [9, 0, 0], sizes = [1, 13, 2], strides = [1, 1, 1]} : vector<13x13x2xf32> to vector<1x13x2xf32>
    %59 = arith.maximumf %57, %58 : vector<1x13x2xf32>
    %60 = vector.extract_strided_slice %41 {offsets = [10, 0, 0], sizes = [1, 13, 2], strides = [1, 1, 1]} : vector<13x13x2xf32> to vector<1x13x2xf32>
    %61 = vector.extract_strided_slice %41 {offsets = [11, 0, 0], sizes = [1, 13, 2], strides = [1, 1, 1]} : vector<13x13x2xf32> to vector<1x13x2xf32>
    %62 = arith.maximumf %60, %61 : vector<1x13x2xf32>
    %63 = tpu.concatenate %47, %50, %53, %56, %59, %62 in 0 : vector<1x13x2xf32>, vector<1x13x2xf32>, vector<1x13x2xf32>, vector<1x13x2xf32>, vector<1x13x2xf32>, vector<1x13x2xf32> -> vector<6x13x2xf32>
    %64 = vector.extract_strided_slice %63 {offsets = [0, 0, 0], sizes = [6, 12, 2], strides = [1, 1, 1]} : vector<6x13x2xf32> to vector<6x12x2xf32>
    %65 = vector.extract_strided_slice %63 {offsets = [0, 1, 0], sizes = [6, 12, 2], strides = [1, 1, 1]} : vector<6x13x2xf32> to vector<6x12x2xf32>
    %66 = arith.maximumf %64, %65 : vector<6x12x2xf32>
    %c0_14 = arith.constant 0 : index
    %c0_15 = arith.constant 0 : index
    %c0_16 = arith.constant 0 : index
    %c0_17 = arith.constant 0 : index
    %67 = vector.load %arg4[%c0_14, %c0_15, %c0_16, %c0_17] : memref<4x6x12x2xf32, #tpu.memory_space<vmem>>, vector<1x6x12x2xf32>
    %68 = vector.shape_cast %67 : vector<1x6x12x2xf32> to vector<6x12x2xf32>
    %69 = vector.shape_cast %66 : vector<6x12x2xf32> to vector<1x6x12x2xf32>
    tpu.vector_store %arg4[%c0_14, %c0_15, %c0_16, %c0_17], %69 {strides = array<i32>} : memref<4x6x12x2xf32, #tpu.memory_space<vmem>>, vector<1x6x12x2xf32>,
    %c1 = arith.constant 1 : index
    %c0_18 = arith.constant 0 : index
    %c0_19 = arith.constant 0 : index
    %c0_20 = arith.constant 0 : index
    %70 = vector.load %arg2[%c1, %c0_18, %c0_19, %c0_20] : memref<4x13x13x2xf32, #tpu.memory_space<vmem>>, vector<1x13x13x2xf32>
    %71 = vector.shape_cast %70 : vector<1x13x13x2xf32> to vector<13x13x2xf32>
    %72 = vector.shape_cast %34 : vector<13x13x2xf32> to vector<1x13x13x2xf32>
    tpu.vector_store %arg2[%c1, %c0_18, %c0_19, %c0_20], %72 {strides = array<i32>} : memref<4x13x13x2xf32, #tpu.memory_space<vmem>>, vector<1x13x13x2xf32>,
    %cst_21 = arith.constant 0.000000e+00 : f32
    %73 = vector.broadcast %cst_21 : f32 to vector<13x13x2xf32>
    %74 = arith.maximumf %34, %73 : vector<13x13x2xf32>
    %c1_22 = arith.constant 1 : index
    %c0_23 = arith.constant 0 : index
    %c0_24 = arith.constant 0 : index
    %c0_25 = arith.constant 0 : index
    %75 = vector.load %arg3[%c1_22, %c0_23, %c0_24, %c0_25] : memref<4x13x13x2xf32, #tpu.memory_space<vmem>>, vector<1x13x13x2xf32>
    %76 = vector.shape_cast %75 : vector<1x13x13x2xf32> to vector<13x13x2xf32>
    %77 = vector.shape_cast %74 : vector<13x13x2xf32> to vector<1x13x13x2xf32>
    tpu.vector_store %arg3[%c1_22, %c0_23, %c0_24, %c0_25], %77 {strides = array<i32>} : memref<4x13x13x2xf32, #tpu.memory_space<vmem>>, vector<1x13x13x2xf32>,
    %78 = vector.extract_strided_slice %74 {offsets = [0, 0, 0], sizes = [1, 13, 2], strides = [1, 1, 1]} : vector<13x13x2xf32> to vector<1x13x2xf32>
    %79 = vector.extract_strided_slice %74 {offsets = [1, 0, 0], sizes = [1, 13, 2], strides = [1, 1, 1]} : vector<13x13x2xf32> to vector<1x13x2xf32>
    %80 = arith.maximumf %78, %79 : vector<1x13x2xf32>
    %81 = vector.extract_strided_slice %74 {offsets = [2, 0, 0], sizes = [1, 13, 2], strides = [1, 1, 1]} : vector<13x13x2xf32> to vector<1x13x2xf32>
    %82 = vector.extract_strided_slice %74 {offsets = [3, 0, 0], sizes = [1, 13, 2], strides = [1, 1, 1]} : vector<13x13x2xf32> to vector<1x13x2xf32>
    %83 = arith.maximumf %81, %82 : vector<1x13x2xf32>
    %84 = vector.extract_strided_slice %74 {offsets = [4, 0, 0], sizes = [1, 13, 2], strides = [1, 1, 1]} : vector<13x13x2xf32> to vector<1x13x2xf32>
    %85 = vector.extract_strided_slice %74 {offsets = [5, 0, 0], sizes = [1, 13, 2], strides = [1, 1, 1]} : vector<13x13x2xf32> to vector<1x13x2xf32>
    %86 = arith.maximumf %84, %85 : vector<1x13x2xf32>
    %87 = vector.extract_strided_slice %74 {offsets = [6, 0, 0], sizes = [1, 13, 2], strides = [1, 1, 1]} : vector<13x13x2xf32> to vector<1x13x2xf32>
    %88 = vector.extract_strided_slice %74 {offsets = [7, 0, 0], sizes = [1, 13, 2], strides = [1, 1, 1]} : vector<13x13x2xf32> to vector<1x13x2xf32>
    %89 = arith.maximumf %87, %88 : vector<1x13x2xf32>
    %90 = vector.extract_strided_slice %74 {offsets = [8, 0, 0], sizes = [1, 13, 2], strides = [1, 1, 1]} : vector<13x13x2xf32> to vector<1x13x2xf32>
    %91 = vector.extract_strided_slice %74 {offsets = [9, 0, 0], sizes = [1, 13, 2], strides = [1, 1, 1]} : vector<13x13x2xf32> to vector<1x13x2xf32>
    %92 = arith.maximumf %90, %91 : vector<1x13x2xf32>
    %93 = vector.extract_strided_slice %74 {offsets = [10, 0, 0], sizes = [1, 13, 2], strides = [1, 1, 1]} : vector<13x13x2xf32> to vector<1x13x2xf32>
    %94 = vector.extract_strided_slice %74 {offsets = [11, 0, 0], sizes = [1, 13, 2], strides = [1, 1, 1]} : vector<13x13x2xf32> to vector<1x13x2xf32>
    %95 = arith.maximumf %93, %94 : vector<1x13x2xf32>
    %96 = tpu.concatenate %80, %83, %86, %89, %92, %95 in 0 : vector<1x13x2xf32>, vector<1x13x2xf32>, vector<1x13x2xf32>, vector<1x13x2xf32>, vector<1x13x2xf32>, vector<1x13x2xf32> -> vector<6x13x2xf32>
    %97 = vector.extract_strided_slice %96 {offsets = [0, 0, 0], sizes = [6, 12, 2], strides = [1, 1, 1]} : vector<6x13x2xf32> to vector<6x12x2xf32>
    %98 = vector.extract_strided_slice %96 {offsets = [0, 1, 0], sizes = [6, 12, 2], strides = [1, 1, 1]} : vector<6x13x2xf32> to vector<6x12x2xf32>
    %99 = arith.maximumf %97, %98 : vector<6x12x2xf32>
    %c1_26 = arith.constant 1 : index
    %c0_27 = arith.constant 0 : index
    %c0_28 = arith.constant 0 : index
    %c0_29 = arith.constant 0 : index
    %100 = vector.load %arg4[%c1_26, %c0_27, %c0_28, %c0_29] : memref<4x6x12x2xf32, #tpu.memory_space<vmem>>, vector<1x6x12x2xf32>
    %101 = vector.shape_cast %100 : vector<1x6x12x2xf32> to vector<6x12x2xf32>
    %102 = vector.shape_cast %99 : vector<6x12x2xf32> to vector<1x6x12x2xf32>
    tpu.vector_store %arg4[%c1_26, %c0_27, %c0_28, %c0_29], %102 {strides = array<i32>} : memref<4x6x12x2xf32, #tpu.memory_space<vmem>>, vector<1x6x12x2xf32>,
    %c2 = arith.constant 2 : index
    %c0_30 = arith.constant 0 : index
    %c0_31 = arith.constant 0 : index
    %c0_32 = arith.constant 0 : index
    %103 = vector.load %arg2[%c2, %c0_30, %c0_31, %c0_32] : memref<4x13x13x2xf32, #tpu.memory_space<vmem>>, vector<1x13x13x2xf32>
    %104 = vector.shape_cast %103 : vector<1x13x13x2xf32> to vector<13x13x2xf32>
    %105 = vector.shape_cast %32 : vector<13x13x2xf32> to vector<1x13x13x2xf32>
    tpu.vector_store %arg2[%c2, %c0_30, %c0_31, %c0_32], %105 {strides = array<i32>} : memref<4x13x13x2xf32, #tpu.memory_space<vmem>>, vector<1x13x13x2xf32>,
    %cst_33 = arith.constant 0.000000e+00 : f32
    %106 = vector.broadcast %cst_33 : f32 to vector<13x13x2xf32>
    %107 = arith.maximumf %32, %106 : vector<13x13x2xf32>
    %c2_34 = arith.constant 2 : index
    %c0_35 = arith.constant 0 : index
    %c0_36 = arith.constant 0 : index
    %c0_37 = arith.constant 0 : index
    %108 = vector.load %arg3[%c2_34, %c0_35, %c0_36, %c0_37] : memref<4x13x13x2xf32, #tpu.memory_space<vmem>>, vector<1x13x13x2xf32>
    %109 = vector.shape_cast %108 : vector<1x13x13x2xf32> to vector<13x13x2xf32>
    %110 = vector.shape_cast %107 : vector<13x13x2xf32> to vector<1x13x13x2xf32>
    tpu.vector_store %arg3[%c2_34, %c0_35, %c0_36, %c0_37], %110 {strides = array<i32>} : memref<4x13x13x2xf32, #tpu.memory_space<vmem>>, vector<1x13x13x2xf32>,
    %111 = vector.extract_strided_slice %107 {offsets = [0, 0, 0], sizes = [1, 13, 2], strides = [1, 1, 1]} : vector<13x13x2xf32> to vector<1x13x2xf32>
    %112 = vector.extract_strided_slice %107 {offsets = [1, 0, 0], sizes = [1, 13, 2], strides = [1, 1, 1]} : vector<13x13x2xf32> to vector<1x13x2xf32>
    %113 = arith.maximumf %111, %112 : vector<1x13x2xf32>
    %114 = vector.extract_strided_slice %107 {offsets = [2, 0, 0], sizes = [1, 13, 2], strides = [1, 1, 1]} : vector<13x13x2xf32> to vector<1x13x2xf32>
    %115 = vector.extract_strided_slice %107 {offsets = [3, 0, 0], sizes = [1, 13, 2], strides = [1, 1, 1]} : vector<13x13x2xf32> to vector<1x13x2xf32>
    %116 = arith.maximumf %114, %115 : vector<1x13x2xf32>
    %117 = vector.extract_strided_slice %107 {offsets = [4, 0, 0], sizes = [1, 13, 2], strides = [1, 1, 1]} : vector<13x13x2xf32> to vector<1x13x2xf32>
    %118 = vector.extract_strided_slice %107 {offsets = [5, 0, 0], sizes = [1, 13, 2], strides = [1, 1, 1]} : vector<13x13x2xf32> to vector<1x13x2xf32>
    %119 = arith.maximumf %117, %118 : vector<1x13x2xf32>
    %120 = vector.extract_strided_slice %107 {offsets = [6, 0, 0], sizes = [1, 13, 2], strides = [1, 1, 1]} : vector<13x13x2xf32> to vector<1x13x2xf32>
    %121 = vector.extract_strided_slice %107 {offsets = [7, 0, 0], sizes = [1, 13, 2], strides = [1, 1, 1]} : vector<13x13x2xf32> to vector<1x13x2xf32>
    %122 = arith.maximumf %120, %121 : vector<1x13x2xf32>
    %123 = vector.extract_strided_slice %107 {offsets = [8, 0, 0], sizes = [1, 13, 2], strides = [1, 1, 1]} : vector<13x13x2xf32> to vector<1x13x2xf32>
    %124 = vector.extract_strided_slice %107 {offsets = [9, 0, 0], sizes = [1, 13, 2], strides = [1, 1, 1]} : vector<13x13x2xf32> to vector<1x13x2xf32>
    %125 = arith.maximumf %123, %124 : vector<1x13x2xf32>
    %126 = vector.extract_strided_slice %107 {offsets = [10, 0, 0], sizes = [1, 13, 2], strides = [1, 1, 1]} : vector<13x13x2xf32> to vector<1x13x2xf32>
    %127 = vector.extract_strided_slice %107 {offsets = [11, 0, 0], sizes = [1, 13, 2], strides = [1, 1, 1]} : vector<13x13x2xf32> to vector<1x13x2xf32>
    %128 = arith.maximumf %126, %127 : vector<1x13x2xf32>
    %129 = tpu.concatenate %113, %116, %119, %122, %125, %128 in 0 : vector<1x13x2xf32>, vector<1x13x2xf32>, vector<1x13x2xf32>, vector<1x13x2xf32>, vector<1x13x2xf32>, vector<1x13x2xf32> -> vector<6x13x2xf32>
    %130 = vector.extract_strided_slice %129 {offsets = [0, 0, 0], sizes = [6, 12, 2], strides = [1, 1, 1]} : vector<6x13x2xf32> to vector<6x12x2xf32>
    %131 = vector.extract_strided_slice %129 {offsets = [0, 1, 0], sizes = [6, 12, 2], strides = [1, 1, 1]} : vector<6x13x2xf32> to vector<6x12x2xf32>
    %132 = arith.maximumf %130, %131 : vector<6x12x2xf32>
    %c2_38 = arith.constant 2 : index
    %c0_39 = arith.constant 0 : index
    %c0_40 = arith.constant 0 : index
    %c0_41 = arith.constant 0 : index
    %133 = vector.load %arg4[%c2_38, %c0_39, %c0_40, %c0_41] : memref<4x6x12x2xf32, #tpu.memory_space<vmem>>, vector<1x6x12x2xf32>
    %134 = vector.shape_cast %133 : vector<1x6x12x2xf32> to vector<6x12x2xf32>
    %135 = vector.shape_cast %132 : vector<6x12x2xf32> to vector<1x6x12x2xf32>
    tpu.vector_store %arg4[%c2_38, %c0_39, %c0_40, %c0_41], %135 {strides = array<i32>} : memref<4x6x12x2xf32, #tpu.memory_space<vmem>>, vector<1x6x12x2xf32>,
    %c3 = arith.constant 3 : index
    %c0_42 = arith.constant 0 : index
    %c0_43 = arith.constant 0 : index
    %c0_44 = arith.constant 0 : index
    %136 = vector.load %arg2[%c3, %c0_42, %c0_43, %c0_44] : memref<4x13x13x2xf32, #tpu.memory_space<vmem>>, vector<1x13x13x2xf32>
    %137 = vector.shape_cast %136 : vector<1x13x13x2xf32> to vector<13x13x2xf32>
    %138 = vector.shape_cast %36 : vector<13x13x2xf32> to vector<1x13x13x2xf32>
    tpu.vector_store %arg2[%c3, %c0_42, %c0_43, %c0_44], %138 {strides = array<i32>} : memref<4x13x13x2xf32, #tpu.memory_space<vmem>>, vector<1x13x13x2xf32>,
    %cst_45 = arith.constant 0.000000e+00 : f32
    %139 = vector.broadcast %cst_45 : f32 to vector<13x13x2xf32>
    %140 = arith.maximumf %36, %139 : vector<13x13x2xf32>
    %c3_46 = arith.constant 3 : index
    %c0_47 = arith.constant 0 : index
    %c0_48 = arith.constant 0 : index
    %c0_49 = arith.constant 0 : index
    %141 = vector.load %arg3[%c3_46, %c0_47, %c0_48, %c0_49] : memref<4x13x13x2xf32, #tpu.memory_space<vmem>>, vector<1x13x13x2xf32>
    %142 = vector.shape_cast %141 : vector<1x13x13x2xf32> to vector<13x13x2xf32>
    %143 = vector.shape_cast %140 : vector<13x13x2xf32> to vector<1x13x13x2xf32>
    tpu.vector_store %arg3[%c3_46, %c0_47, %c0_48, %c0_49], %143 {strides = array<i32>} : memref<4x13x13x2xf32, #tpu.memory_space<vmem>>, vector<1x13x13x2xf32>,
    %144 = vector.extract_strided_slice %140 {offsets = [0, 0, 0], sizes = [1, 13, 2], strides = [1, 1, 1]} : vector<13x13x2xf32> to vector<1x13x2xf32>
    %145 = vector.extract_strided_slice %140 {offsets = [1, 0, 0], sizes = [1, 13, 2], strides = [1, 1, 1]} : vector<13x13x2xf32> to vector<1x13x2xf32>
    %146 = arith.maximumf %144, %145 : vector<1x13x2xf32>
    %147 = vector.extract_strided_slice %140 {offsets = [2, 0, 0], sizes = [1, 13, 2], strides = [1, 1, 1]} : vector<13x13x2xf32> to vector<1x13x2xf32>
    %148 = vector.extract_strided_slice %140 {offsets = [3, 0, 0], sizes = [1, 13, 2], strides = [1, 1, 1]} : vector<13x13x2xf32> to vector<1x13x2xf32>
    %149 = arith.maximumf %147, %148 : vector<1x13x2xf32>
    %150 = vector.extract_strided_slice %140 {offsets = [4, 0, 0], sizes = [1, 13, 2], strides = [1, 1, 1]} : vector<13x13x2xf32> to vector<1x13x2xf32>
    %151 = vector.extract_strided_slice %140 {offsets = [5, 0, 0], sizes = [1, 13, 2], strides = [1, 1, 1]} : vector<13x13x2xf32> to vector<1x13x2xf32>
    %152 = arith.maximumf %150, %151 : vector<1x13x2xf32>
    %153 = vector.extract_strided_slice %140 {offsets = [6, 0, 0], sizes = [1, 13, 2], strides = [1, 1, 1]} : vector<13x13x2xf32> to vector<1x13x2xf32>
    %154 = vector.extract_strided_slice %140 {offsets = [7, 0, 0], sizes = [1, 13, 2], strides = [1, 1, 1]} : vector<13x13x2xf32> to vector<1x13x2xf32>
    %155 = arith.maximumf %153, %154 : vector<1x13x2xf32>
    %156 = vector.extract_strided_slice %140 {offsets = [8, 0, 0], sizes = [1, 13, 2], strides = [1, 1, 1]} : vector<13x13x2xf32> to vector<1x13x2xf32>
    %157 = vector.extract_strided_slice %140 {offsets = [9, 0, 0], sizes = [1, 13, 2], strides = [1, 1, 1]} : vector<13x13x2xf32> to vector<1x13x2xf32>
    %158 = arith.maximumf %156, %157 : vector<1x13x2xf32>
    %159 = vector.extract_strided_slice %140 {offsets = [10, 0, 0], sizes = [1, 13, 2], strides = [1, 1, 1]} : vector<13x13x2xf32> to vector<1x13x2xf32>
    %160 = vector.extract_strided_slice %140 {offsets = [11, 0, 0], sizes = [1, 13, 2], strides = [1, 1, 1]} : vector<13x13x2xf32> to vector<1x13x2xf32>
    %161 = arith.maximumf %159, %160 : vector<1x13x2xf32>
    %162 = tpu.concatenate %146, %149, %152, %155, %158, %161 in 0 : vector<1x13x2xf32>, vector<1x13x2xf32>, vector<1x13x2xf32>, vector<1x13x2xf32>, vector<1x13x2xf32>, vector<1x13x2xf32> -> vector<6x13x2xf32>
    %163 = vector.extract_strided_slice %162 {offsets = [0, 0, 0], sizes = [6, 12, 2], strides = [1, 1, 1]} : vector<6x13x2xf32> to vector<6x12x2xf32>
    %164 = vector.extract_strided_slice %162 {offsets = [0, 1, 0], sizes = [6, 12, 2], strides = [1, 1, 1]} : vector<6x13x2xf32> to vector<6x12x2xf32>
    %165 = arith.maximumf %163, %164 : vector<6x12x2xf32>
    %c3_50 = arith.constant 3 : index
    %c0_51 = arith.constant 0 : index
    %c0_52 = arith.constant 0 : index
    %c0_53 = arith.constant 0 : index
    %166 = vector.load %arg4[%c3_50, %c0_51, %c0_52, %c0_53] : memref<4x6x12x2xf32, #tpu.memory_space<vmem>>, vector<1x6x12x2xf32>
    %167 = vector.shape_cast %166 : vector<1x6x12x2xf32> to vector<6x12x2xf32>
    %168 = vector.shape_cast %165 : vector<6x12x2xf32> to vector<1x6x12x2xf32>
    tpu.vector_store %arg4[%c3_50, %c0_51, %c0_52, %c0_53], %168 {strides = array<i32>} : memref<4x6x12x2xf32, #tpu.memory_space<vmem>>, vector<1x6x12x2xf32>,
    return
  }
  func.func @transform_0(%arg0: i32) -> (i32, i32, i32) {
    %c0_i32 = arith.constant 0 : i32
    %c0_i32_0 = arith.constant 0 : i32
    %c0_i32_1 = arith.constant 0 : i32
    return %c0_i32, %c0_i32_0, %arg0 : i32, i32, i32
  }
  func.func @transform_1(%arg0: i32) -> (i32, i32, i32, i32) {
    %c0_i32 = arith.constant 0 : i32
    %c0_i32_0 = arith.constant 0 : i32
    %c0_i32_1 = arith.constant 0 : i32
    %c0_i32_2 = arith.constant 0 : i32
    return %c0_i32, %c0_i32_0, %c0_i32_1, %arg0 : i32, i32, i32, i32
  }
  func.func @transform_2(%arg0: i32) -> (i32, i32, i32, i32) {
    %c0_i32 = arith.constant 0 : i32
    %c0_i32_0 = arith.constant 0 : i32
    %c0_i32_1 = arith.constant 0 : i32
    %c0_i32_2 = arith.constant 0 : i32
    return %c0_i32, %c0_i32_0, %c0_i32_1, %arg0 : i32, i32, i32, i32
  }
  func.func @transform_3(%arg0: i32) -> (i32, i32, i32, i32) {
    %c0_i32 = arith.constant 0 : i32
    %c0_i32_0 = arith.constant 0 : i32
    %c0_i32_1 = arith.constant 0 : i32
    %c0_i32_2 = arith.constant 0 : i32
    return %c0_i32, %c0_i32_0, %c0_i32_1, %arg0 : i32, i32, i32, i32
  }
}

</mosaic_0001>

<llo_original>
// kernel: net_forward.1
$region0: #{net_forward.1}
  #allocation0 [shape = 'u32[]', space=smem, size = 0x4, offset = 0x4, fixed_abs, tag = 'smem constant byte address 0x4 - core index']
  #allocation1 [shape = 'u32[144,128]{1,0:T(1,128)}', space=vmem, size = 0x12000, scoped, tag = 'internal scratch']
  %s0 = inlined_call_operand.vmem [shape: f32[16,16,2], index: 0, kind: input, shape index: {}]
  %s1 = inlined_call_operand.vmem [shape: f32[4,13,13,2], index: 1, kind: output, shape index: {0}]
  %s2 = inlined_call_operand.vmem [shape: f32[4,13,13,2], index: 2, kind: output, shape index: {1}]
  %s3 = inlined_call_operand.vmem [shape: f32[4,6,12,2], index: 3, kind: output, shape index: {2}]
  %4 = xla_tuple %s1, %s2, %s3
  %s5 = sld [smem:[#allocation0]]
  $region30: #{net_forward.1} parent=0
    _
  %s7 = ssub.s32 1, %s5
  %s8 = scalar_select 0, %s7, %s5
  // Predicated region
  $region2: #{net_forward.1} parent=0 // pred_check
    _
  $region3: #{net_forward.1} parent=0 // pred_check_branch
    %10 = sbr.rel (0) target = $region5
  $region4: #{net_forward.1} parent=0 // pred_region
    _
  $region5: #{net_forward.1} parent=0 // pred_fallthru
    _
  %v11 = vld [vmem:[%s0] sm:$0xff]
  %v12 = vld [vmem:[%s0 + $0x8] sm:$0xff]
  %v13 = vld [vmem:[%s0 + $0x10] sm:$0xff]
  %v14 = vld [vmem:[%s0 + $0x18] sm:$0xff]
  %v15 = vld [vmem:[%s0 + $0x20] sm:$0xff]
  %v16 = vld [vmem:[%s0 + $0x28] sm:$0xff]
  %v17 = vld [vmem:[%s0 + $0x30] sm:$0xff]
  %v18 = vld [vmem:[%s0 + $0x38] sm:$0xff]
  %v19 = vld [vmem:[%s0 + $0x40] sm:$0xff]
  %v20 = vld [vmem:[%s0 + $0x48] sm:$0xff]
  %v21 = vld [vmem:[%s0 + $0x50] sm:$0xff]
  %v22 = vld [vmem:[%s0 + $0x58] sm:$0xff]
  %v23 = vld [vmem:[%s0 + $0x60] sm:$0xff]
  %v24 = vld [vmem:[%s0 + $0x68] sm:$0xff]
  %v25 = vld [vmem:[%s0 + $0x70] sm:$0xff]
  %v26 = vld [vmem:[%s0 + $0x78] sm:$0xff]
  %v27 = vld [vmem:[%s0 + $0x80] sm:$0xff]
  %v28 = vld [vmem:[%s0 + $0x88] sm:$0xff]
  %v29 = vld [vmem:[%s0 + $0x90] sm:$0xff]
  %v30 = vld [vmem:[%s0 + $0x98] sm:$0xff]
  %v31 = vld [vmem:[%s0 + $0xa0] sm:$0xff]
  %v32 = vld [vmem:[%s0 + $0xa8] sm:$0xff]
  %v33 = vld [vmem:[%s0 + $0xb0] sm:$0xff]
  %v34 = vld [vmem:[%s0 + $0xb8] sm:$0xff]
  %v35 = vld [vmem:[%s0 + $0xc0] sm:$0xff]
  %v36 = vld [vmem:[%s0 + $0xc8] sm:$0xff]
  %v37 = vld [vmem:[%s0 + $0xd0] sm:$0xff]
  %v38 = vld [vmem:[%s0 + $0xd8] sm:$0xff]
  %v39 = vld [vmem:[%s0 + $0xe0] sm:$0xff]
  %v40 = vld [vmem:[%s0 + $0xe8] sm:$0xff]
  %v41 = vld [vmem:[%s0 + $0xf0] sm:$0xff]
  %v42 = vld [vmem:[%s0 + $0xf8] sm:$0xff]
  %v43 = vadd.f32 %v11, %v13
  %v44 = vadd.f32 %v12, %v14
  %v45 = vadd.f32 %v13, %v15
  %v46 = vadd.f32 %v14, %v16
  %v47 = vadd.f32 %v15, %v17
  %v48 = vadd.f32 %v16, %v18
  %v49 = vadd.f32 %v17, %v19
  %v50 = vadd.f32 %v18, %v20
  %v51 = vadd.f32 %v19, %v21
  %v52 = vadd.f32 %v20, %v22
  %v53 = vadd.f32 %v21, %v23
  %v54 = vadd.f32 %v22, %v24
  %v55 = vadd.f32 %v23, %v25
  %v56 = vadd.f32 %v24, %v26
  %v57 = vadd.f32 %v25, %v27
  %v58 = vadd.f32 %v26, %v28
  %v59 = vadd.f32 %v27, %v29
  %v60 = vadd.f32 %v28, %v30
  %v61 = vadd.f32 %v29, %v31
  %v62 = vadd.f32 %v30, %v32
  %v63 = vadd.f32 %v31, %v33
  %v64 = vadd.f32 %v32, %v34
  %v65 = vadd.f32 %v33, %v35
  %v66 = vadd.f32 %v34, %v36
  %v67 = vadd.f32 %v35, %v37
  %v68 = vadd.f32 %v36, %v38
  %v69 = vadd.f32 %v43, %v15
  %v70 = vadd.f32 %v44, %v16
  %v71 = vadd.f32 %v45, %v17
  %v72 = vadd.f32 %v46, %v18
  %v73 = vadd.f32 %v47, %v19
  %v74 = vadd.f32 %v48, %v20
  %v75 = vadd.f32 %v49, %v21
  %v76 = vadd.f32 %v50, %v22
  %v77 = vadd.f32 %v51, %v23
  %v78 = vadd.f32 %v52, %v24
  %v79 = vadd.f32 %v53, %v25
  %v80 = vadd.f32 %v54, %v26
  %v81 = vadd.f32 %v55, %v27
  %v82 = vadd.f32 %v56, %v28
  %v83 = vadd.f32 %v57, %v29
  %v84 = vadd.f32 %v58, %v30
  %v85 = vadd.f32 %v59, %v31
  %v86 = vadd.f32 %v60, %v32
  %v87 = vadd.f32 %v61, %v33
  %v88 = vadd.f32 %v62, %v34
  %v89 = vadd.f32 %v63, %v35
  %v90 = vadd.f32 %v64, %v36
  %v91 = vadd.f32 %v65, %v37
  %v92 = vadd.f32 %v66, %v38
  %v93 = vadd.f32 %v67, %v39
  %v94 = vadd.f32 %v68, %v40
  %v95 = vadd.f32 %v69, %v17
  %v96 = vadd.f32 %v70, %v18
  %v97 = vadd.f32 %v71, %v19
  %v98 = vadd.f32 %v72, %v20
  %v99 = vadd.f32 %v73, %v21
  %v100 = vadd.f32 %v74, %v22
  %v101 = vadd.f32 %v75, %v23
  %v102 = vadd.f32 %v76, %v24
  %v103 = vadd.f32 %v77, %v25
  %v104 = vadd.f32 %v78, %v26
  %v105 = vadd.f32 %v79, %v27
  %v106 = vadd.f32 %v80, %v28
  %v107 = vadd.f32 %v81, %v29
  %v108 = vadd.f32 %v82, %v30
  %v109 = vadd.f32 %v83, %v31
  %v110 = vadd.f32 %v84, %v32
  %v111 = vadd.f32 %v85, %v33
  %v112 = vadd.f32 %v86, %v34
  %v113 = vadd.f32 %v87, %v35
  %v114 = vadd.f32 %v88, %v36
  %v115 = vadd.f32 %v89, %v37
  %v116 = vadd.f32 %v90, %v38
  %v117 = vadd.f32 %v91, %v39
  %v118 = vadd.f32 %v92, %v40
  %v119 = vadd.f32 %v93, %v41
  %v120 = vadd.f32 %v94, %v42
  %vm153 = vcmask 1046528
  %v154 = vrot.slane %v11, 1
  %v155 = vrot.slane %v12, 1
  %v156 = vsel %vm153, %v154, %v155
  %v157 = vrot.slane %v13, 1
  %v158 = vrot.slane %v14, 1
  %v159 = vsel %vm153, %v157, %v158
  %v160 = vrot.slane %v15, 1
  %v161 = vrot.slane %v16, 1
  %v162 = vsel %vm153, %v160, %v161
  %v163 = vrot.slane %v17, 1
  %v164 = vrot.slane %v18, 1
  %v165 = vsel %vm153, %v163, %v164
  %v166 = vrot.slane %v19, 1
  %v167 = vrot.slane %v20, 1
  %v168 = vsel %vm153, %v166, %v167
  %v169 = vrot.slane %v21, 1
  %v170 = vrot.slane %v22, 1
  %v171 = vsel %vm153, %v169, %v170
  %v172 = vrot.slane %v23, 1
  %v173 = vrot.slane %v24, 1
  %v174 = vsel %vm153, %v172, %v173
  %v175 = vrot.slane %v25, 1
  %v176 = vrot.slane %v26, 1
  %v177 = vsel %vm153, %v175, %v176
  %v178 = vrot.slane %v27, 1
  %v179 = vrot.slane %v28, 1
  %v180 = vsel %vm153, %v178, %v179
  %v181 = vrot.slane %v29, 1
  %v182 = vrot.slane %v30, 1
  %v183 = vsel %vm153, %v181, %v182
  %v184 = vrot.slane %v31, 1
  %v185 = vrot.slane %v32, 1
  %v186 = vsel %vm153, %v184, %v185
  %v187 = vrot.slane %v33, 1
  %v188 = vrot.slane %v34, 1
  %v189 = vsel %vm153, %v187, %v188
  %v190 = vrot.slane %v35, 1
  %v191 = vrot.slane %v36, 1
  %v192 = vsel %vm153, %v190, %v191
  %v193 = vrot.slane %v37, 1
  %v194 = vrot.slane %v38, 1
  %v195 = vsel %vm153, %v193, %v194
  %v196 = vrot.slane %v39, 1
  %v197 = vrot.slane %v40, 1
  %v198 = vsel %vm153, %v196, %v197
  %v199 = vrot.slane %v41, 1
  %v200 = vrot.slane %v42, 1
  %v201 = vsel %vm153, %v199, %v200
  %v234 = vadd.f32 %v11, %v156
  %v235 = vadd.f32 %v12, %v155
  %v236 = vadd.f32 %v13, %v159
  %v237 = vadd.f32 %v14, %v158
  %v238 = vadd.f32 %v15, %v162
  %v239 = vadd.f32 %v16, %v161
  %v240 = vadd.f32 %v17, %v165
  %v241 = vadd.f32 %v18, %v164
  %v242 = vadd.f32 %v19, %v168
  %v243 = vadd.f32 %v20, %v167
  %v244 = vadd.f32 %v21, %v171
  %v245 = vadd.f32 %v22, %v170
  %v246 = vadd.f32 %v23, %v174
  %v247 = vadd.f32 %v24, %v173
  %v248 = vadd.f32 %v25, %v177
  %v249 = vadd.f32 %v26, %v176
  %v250 = vadd.f32 %v27, %v180
  %v251 = vadd.f32 %v28, %v179
  %v252 = vadd.f32 %v29, %v183
  %v253 = vadd.f32 %v30, %v182
  %v254 = vadd.f32 %v31, %v186
  %v255 = vadd.f32 %v32, %v185
  %v256 = vadd.f32 %v33, %v189
  %v257 = vadd.f32 %v34, %v188
  %v258 = vadd.f32 %v35, %v192
  %v259 = vadd.f32 %v36, %v191
  %v260 = vadd.f32 %v37, %v195
  %v261 = vadd.f32 %v38, %v194
  %v262 = vadd.f32 %v39, %v198
  %v263 = vadd.f32 %v40, %v197
  %v264 = vadd.f32 %v41, %v201
  %v265 = vadd.f32 %v42, %v200
  %vm266 = vcmask 1045504
  %v267 = vrot.slane %v11, 2
  %v268 = vrot.slane %v12, 2
  %v269 = vsel %vm266, %v267, %v268
  %v270 = vrot.slane %v13, 2
  %v271 = vrot.slane %v14, 2
  %v272 = vsel %vm266, %v270, %v271
  %v273 = vrot.slane %v15, 2
  %v274 = vrot.slane %v16, 2
  %v275 = vsel %vm266, %v273, %v274
  %v276 = vrot.slane %v17, 2
  %v277 = vrot.slane %v18, 2
  %v278 = vsel %vm266, %v276, %v277
  %v279 = vrot.slane %v19, 2
  %v280 = vrot.slane %v20, 2
  %v281 = vsel %vm266, %v279, %v280
  %v282 = vrot.slane %v21, 2
  %v283 = vrot.slane %v22, 2
  %v284 = vsel %vm266, %v282, %v283
  %v285 = vrot.slane %v23, 2
  %v286 = vrot.slane %v24, 2
  %v287 = vsel %vm266, %v285, %v286
  %v288 = vrot.slane %v25, 2
  %v289 = vrot.slane %v26, 2
  %v290 = vsel %vm266, %v288, %v289
  %v291 = vrot.slane %v27, 2
  %v292 = vrot.slane %v28, 2
  %v293 = vsel %vm266, %v291, %v292
  %v294 = vrot.slane %v29, 2
  %v295 = vrot.slane %v30, 2
  %v296 = vsel %vm266, %v294, %v295
  %v297 = vrot.slane %v31, 2
  %v298 = vrot.slane %v32, 2
  %v299 = vsel %vm266, %v297, %v298
  %v300 = vrot.slane %v33, 2
  %v301 = vrot.slane %v34, 2
  %v302 = vsel %vm266, %v300, %v301
  %v303 = vrot.slane %v35, 2
  %v304 = vrot.slane %v36, 2
  %v305 = vsel %vm266, %v303, %v304
  %v306 = vrot.slane %v37, 2
  %v307 = vrot.slane %v38, 2
  %v308 = vsel %vm266, %v306, %v307
  %v309 = vrot.slane %v39, 2
  %v310 = vrot.slane %v40, 2
  %v311 = vsel %vm266, %v309, %v310
  %v312 = vrot.slane %v41, 2
  %v313 = vrot.slane %v42, 2
  %v314 = vsel %vm266, %v312, %v313
  %v347 = vadd.f32 %v234, %v269
  %v348 = vadd.f32 %v235, %v268
  %v349 = vadd.f32 %v236, %v272
  %v350 = vadd.f32 %v237, %v271
  %v351 = vadd.f32 %v238, %v275
  %v352 = vadd.f32 %v239, %v274
  %v353 = vadd.f32 %v240, %v278
  %v354 = vadd.f32 %v241, %v277
  %v355 = vadd.f32 %v242, %v281
  %v356 = vadd.f32 %v243, %v280
  %v357 = vadd.f32 %v244, %v284
  %v358 = vadd.f32 %v245, %v283
  %v359 = vadd.f32 %v246, %v287
  %v360 = vadd.f32 %v247, %v286
  %v361 = vadd.f32 %v248, %v290
  %v362 = vadd.f32 %v249, %v289
  %v363 = vadd.f32 %v250, %v293
  %v364 = vadd.f32 %v251, %v292
  %v365 = vadd.f32 %v252, %v296
  %v366 = vadd.f32 %v253, %v295
  %v367 = vadd.f32 %v254, %v299
  %v368 = vadd.f32 %v255, %v298
  %v369 = vadd.f32 %v256, %v302
  %v370 = vadd.f32 %v257, %v301
  %v371 = vadd.f32 %v258, %v305
  %v372 = vadd.f32 %v259, %v304
  %v373 = vadd.f32 %v260, %v308
  %v374 = vadd.f32 %v261, %v307
  %v375 = vadd.f32 %v262, %v311
  %v376 = vadd.f32 %v263, %v310
  %v377 = vadd.f32 %v264, %v314
  %v378 = vadd.f32 %v265, %v313
  %vm379 = vcmask 1044480
  %v380 = vrot.slane %v11, 3
  %v381 = vrot.slane %v12, 3
  %v382 = vsel %vm379, %v380, %v381
  %v383 = vrot.slane %v13, 3
  %v384 = vrot.slane %v14, 3
  %v385 = vsel %vm379, %v383, %v384
  %v386 = vrot.slane %v15, 3
  %v387 = vrot.slane %v16, 3
  %v388 = vsel %vm379, %v386, %v387
  %v389 = vrot.slane %v17, 3
  %v390 = vrot.slane %v18, 3
  %v391 = vsel %vm379, %v389, %v390
  %v392 = vrot.slane %v19, 3
  %v393 = vrot.slane %v20, 3
  %v394 = vsel %vm379, %v392, %v393
  %v395 = vrot.slane %v21, 3
  %v396 = vrot.slane %v22, 3
  %v397 = vsel %vm379, %v395, %v396
  %v398 = vrot.slane %v23, 3
  %v399 = vrot.slane %v24, 3
  %v400 = vsel %vm379, %v398, %v399
  %v401 = vrot.slane %v25, 3
  %v402 = vrot.slane %v26, 3
  %v403 = vsel %vm379, %v401, %v402
  %v404 = vrot.slane %v27, 3
  %v405 = vrot.slane %v28, 3
  %v406 = vsel %vm379, %v404, %v405
  %v407 = vrot.slane %v29, 3
  %v408 = vrot.slane %v30, 3
  %v409 = vsel %vm379, %v407, %v408
  %v410 = vrot.slane %v31, 3
  %v411 = vrot.slane %v32, 3
  %v412 = vsel %vm379, %v410, %v411
  %v413 = vrot.slane %v33, 3
  %v414 = vrot.slane %v34, 3
  %v415 = vsel %vm379, %v413, %v414
  %v416 = vrot.slane %v35, 3
  %v417 = vrot.slane %v36, 3
  %v418 = vsel %vm379, %v416, %v417
  %v419 = vrot.slane %v37, 3
  %v420 = vrot.slane %v38, 3
  %v421 = vsel %vm379, %v419, %v420
  %v422 = vrot.slane %v39, 3
  %v423 = vrot.slane %v40, 3
  %v424 = vsel %vm379, %v422, %v423
  %v425 = vrot.slane %v41, 3
  %v426 = vrot.slane %v42, 3
  %v427 = vsel %vm379, %v425, %v426
  %v460 = vadd.f32 %v347, %v382
  %v461 = vadd.f32 %v348, %v381
  %v462 = vadd.f32 %v349, %v385
  %v463 = vadd.f32 %v350, %v384
  %v464 = vadd.f32 %v351, %v388
  %v465 = vadd.f32 %v352, %v387
  %v466 = vadd.f32 %v353, %v391
  %v467 = vadd.f32 %v354, %v390
  %v468 = vadd.f32 %v355, %v394
  %v469 = vadd.f32 %v356, %v393
  %v470 = vadd.f32 %v357, %v397
  %v471 = vadd.f32 %v358, %v396
  %v472 = vadd.f32 %v359, %v400
  %v473 = vadd.f32 %v360, %v399
  %v474 = vadd.f32 %v361, %v403
  %v475 = vadd.f32 %v362, %v402
  %v476 = vadd.f32 %v363, %v406
  %v477 = vadd.f32 %v364, %v405
  %v478 = vadd.f32 %v365, %v409
  %v479 = vadd.f32 %v366, %v408
  %v480 = vadd.f32 %v367, %v412
  %v481 = vadd.f32 %v368, %v411
  %v482 = vadd.f32 %v369, %v415
  %v483 = vadd.f32 %v370, %v414
  %v484 = vadd.f32 %v371, %v418
  %v485 = vadd.f32 %v372, %v417
  %v486 = vadd.f32 %v373, %v421
  %v487 = vadd.f32 %v374, %v420
  %v488 = vadd.f32 %v375, %v424
  %v489 = vadd.f32 %v376, %v423
  %v490 = vadd.f32 %v377, %v427
  %v491 = vadd.f32 %v378, %v426
  %v492 = vsub.f32 0.0, %v95
  %v493 = vsub.f32 0.0, %v96
  %v494 = vsub.f32 0.0, %v97
  %v495 = vsub.f32 0.0, %v98
  %v496 = vsub.f32 0.0, %v99
  %v497 = vsub.f32 0.0, %v100
  %v498 = vsub.f32 0.0, %v101
  %v499 = vsub.f32 0.0, %v102
  %v500 = vsub.f32 0.0, %v103
  %v501 = vsub.f32 0.0, %v104
  %v502 = vsub.f32 0.0, %v105
  %v503 = vsub.f32 0.0, %v106
  %v504 = vsub.f32 0.0, %v107
  %v505 = vsub.f32 0.0, %v108
  %v506 = vsub.f32 0.0, %v109
  %v507 = vsub.f32 0.0, %v110
  %v508 = vsub.f32 0.0, %v111
  %v509 = vsub.f32 0.0, %v112
  %v510 = vsub.f32 0.0, %v113
  %v511 = vsub.f32 0.0, %v114
  %v512 = vsub.f32 0.0, %v115
  %v513 = vsub.f32 0.0, %v116
  %v514 = vsub.f32 0.0, %v117
  %v515 = vsub.f32 0.0, %v118
  %v516 = vsub.f32 0.0, %v119
  %v517 = vsub.f32 0.0, %v120
  %v544 = vrot.slane %v95, 1
  %v545 = vrot.slane %v96, 1
  %v546 = vsel %vm153, %v544, %v545
  %v547 = vrot.slane %v97, 1
  %v548 = vrot.slane %v98, 1
  %v549 = vsel %vm153, %v547, %v548
  %v550 = vrot.slane %v99, 1
  %v551 = vrot.slane %v100, 1
  %v552 = vsel %vm153, %v550, %v551
  %v553 = vrot.slane %v101, 1
  %v554 = vrot.slane %v102, 1
  %v555 = vsel %vm153, %v553, %v554
  %v556 = vrot.slane %v103, 1
  %v557 = vrot.slane %v104, 1
  %v558 = vsel %vm153, %v556, %v557
  %v559 = vrot.slane %v105, 1
  %v560 = vrot.slane %v106, 1
  %v561 = vsel %vm153, %v559, %v560
  %v562 = vrot.slane %v107, 1
  %v563 = vrot.slane %v108, 1
  %v564 = vsel %vm153, %v562, %v563
  %v565 = vrot.slane %v109, 1
  %v566 = vrot.slane %v110, 1
  %v567 = vsel %vm153, %v565, %v566
  %v568 = vrot.slane %v111, 1
  %v569 = vrot.slane %v112, 1
  %v570 = vsel %vm153, %v568, %v569
  %v571 = vrot.slane %v113, 1
  %v572 = vrot.slane %v114, 1
  %v573 = vsel %vm153, %v571, %v572
  %v574 = vrot.slane %v115, 1
  %v575 = vrot.slane %v116, 1
  %v576 = vsel %vm153, %v574, %v575
  %v577 = vrot.slane %v117, 1
  %v578 = vrot.slane %v118, 1
  %v579 = vsel %vm153, %v577, %v578
  %v580 = vrot.slane %v119, 1
  %v581 = vrot.slane %v120, 1
  %v582 = vsel %vm153, %v580, %v581
  %v609 = vsub.f32 %v492, %v546
  %v610 = vsub.f32 %v493, %v545
  %v611 = vsub.f32 %v494, %v549
  %v612 = vsub.f32 %v495, %v548
  %v613 = vsub.f32 %v496, %v552
  %v614 = vsub.f32 %v497, %v551
  %v615 = vsub.f32 %v498, %v555
  %v616 = vsub.f32 %v499, %v554
  %v617 = vsub.f32 %v500, %v558
  %v618 = vsub.f32 %v501, %v557
  %v619 = vsub.f32 %v502, %v561
  %v620 = vsub.f32 %v503, %v560
  %v621 = vsub.f32 %v504, %v564
  %v622 = vsub.f32 %v505, %v563
  %v623 = vsub.f32 %v506, %v567
  %v624 = vsub.f32 %v507, %v566
  %v625 = vsub.f32 %v508, %v570
  %v626 = vsub.f32 %v509, %v569
  %v627 = vsub.f32 %v510, %v573
  %v628 = vsub.f32 %v511, %v572
  %v629 = vsub.f32 %v512, %v576
  %v630 = vsub.f32 %v513, %v575
  %v631 = vsub.f32 %v514, %v579
  %v632 = vsub.f32 %v515, %v578
  %v633 = vsub.f32 %v516, %v582
  %v634 = vsub.f32 %v517, %v581
  %v635 = vrot.slane %v95, 2
  %v636 = vrot.slane %v96, 2
  %v637 = vsel %vm266, %v635, %v636
  %v638 = vrot.slane %v97, 2
  %v639 = vrot.slane %v98, 2
  %v640 = vsel %vm266, %v638, %v639
  %v641 = vrot.slane %v99, 2
  %v642 = vrot.slane %v100, 2
  %v643 = vsel %vm266, %v641, %v642
  %v644 = vrot.slane %v101, 2
  %v645 = vrot.slane %v102, 2
  %v646 = vsel %vm266, %v644, %v645
  %v647 = vrot.slane %v103, 2
  %v648 = vrot.slane %v104, 2
  %v649 = vsel %vm266, %v647, %v648
  %v650 = vrot.slane %v105, 2
  %v651 = vrot.slane %v106, 2
  %v652 = vsel %vm266, %v650, %v651
  %v653 = vrot.slane %v107, 2
  %v654 = vrot.slane %v108, 2
  %v655 = vsel %vm266, %v653, %v654
  %v656 = vrot.slane %v109, 2
  %v657 = vrot.slane %v110, 2
  %v658 = vsel %vm266, %v656, %v657
  %v659 = vrot.slane %v111, 2
  %v660 = vrot.slane %v112, 2
  %v661 = vsel %vm266, %v659, %v660
  %v662 = vrot.slane %v113, 2
  %v663 = vrot.slane %v114, 2
  %v664 = vsel %vm266, %v662, %v663
  %v665 = vrot.slane %v115, 2
  %v666 = vrot.slane %v116, 2
  %v667 = vsel %vm266, %v665, %v666
  %v668 = vrot.slane %v117, 2
  %v669 = vrot.slane %v118, 2
  %v670 = vsel %vm266, %v668, %v669
  %v671 = vrot.slane %v119, 2
  %v672 = vrot.slane %v120, 2
  %v673 = vsel %vm266, %v671, %v672
  %v700 = vadd.f32 %v609, %v637
  %v701 = vadd.f32 %v610, %v636
  %v702 = vadd.f32 %v611, %v640
  %v703 = vadd.f32 %v612, %v639
  %v704 = vadd.f32 %v613, %v643
  %v705 = vadd.f32 %v614, %v642
  %v706 = vadd.f32 %v615, %v646
  %v707 = vadd.f32 %v616, %v645
  %v708 = vadd.f32 %v617, %v649
  %v709 = vadd.f32 %v618, %v648
  %v710 = vadd.f32 %v619, %v652
  %v711 = vadd.f32 %v620, %v651
  %v712 = vadd.f32 %v621, %v655
  %v713 = vadd.f32 %v622, %v654
  %v714 = vadd.f32 %v623, %v658
  %v715 = vadd.f32 %v624, %v657
  %v716 = vadd.f32 %v625, %v661
  %v717 = vadd.f32 %v626, %v660
  %v718 = vadd.f32 %v627, %v664
  %v719 = vadd.f32 %v628, %v663
  %v720 = vadd.f32 %v629, %v667
  %v721 = vadd.f32 %v630, %v666
  %v722 = vadd.f32 %v631, %v670
  %v723 = vadd.f32 %v632, %v669
  %v724 = vadd.f32 %v633, %v673
  %v725 = vadd.f32 %v634, %v672
  %v726 = vrot.slane %v95, 3
  %v727 = vrot.slane %v96, 3
  %v728 = vsel %vm379, %v726, %v727
  %v729 = vrot.slane %v97, 3
  %v730 = vrot.slane %v98, 3
  %v731 = vsel %vm379, %v729, %v730
  %v732 = vrot.slane %v99, 3
  %v733 = vrot.slane %v100, 3
  %v734 = vsel %vm379, %v732, %v733
  %v735 = vrot.slane %v101, 3
  %v736 = vrot.slane %v102, 3
  %v737 = vsel %vm379, %v735, %v736
  %v738 = vrot.slane %v103, 3
  %v739 = vrot.slane %v104, 3
  %v740 = vsel %vm379, %v738, %v739
  %v741 = vrot.slane %v105, 3
  %v742 = vrot.slane %v106, 3
  %v743 = vsel %vm379, %v741, %v742
  %v744 = vrot.slane %v107, 3
  %v745 = vrot.slane %v108, 3
  %v746 = vsel %vm379, %v744, %v745
  %v747 = vrot.slane %v109, 3
  %v748 = vrot.slane %v110, 3
  %v749 = vsel %vm379, %v747, %v748
  %v750 = vrot.slane %v111, 3
  %v751 = vrot.slane %v112, 3
  %v752 = vsel %vm379, %v750, %v751
  %v753 = vrot.slane %v113, 3
  %v754 = vrot.slane %v114, 3
  %v755 = vsel %vm379, %v753, %v754
  %v756 = vrot.slane %v115, 3
  %v757 = vrot.slane %v116, 3
  %v758 = vsel %vm379, %v756, %v757
  %v759 = vrot.slane %v117, 3
  %v760 = vrot.slane %v118, 3
  %v761 = vsel %vm379, %v759, %v760
  %v762 = vrot.slane %v119, 3
  %v763 = vrot.slane %v120, 3
  %v764 = vsel %vm379, %v762, %v763
  %v791 = vadd.f32 %v700, %v728
  %v792 = vadd.f32 %v701, %v727
  %v793 = vadd.f32 %v702, %v731
  %v794 = vadd.f32 %v703, %v730
  %v795 = vadd.f32 %v704, %v734
  %v796 = vadd.f32 %v705, %v733
  %v797 = vadd.f32 %v706, %v737
  %v798 = vadd.f32 %v707, %v736
  %v799 = vadd.f32 %v708, %v740
  %v800 = vadd.f32 %v709, %v739
  %v801 = vadd.f32 %v710, %v743
  %v802 = vadd.f32 %v711, %v742
  %v803 = vadd.f32 %v712, %v746
  %v804 = vadd.f32 %v713, %v745
  %v805 = vadd.f32 %v714, %v749
  %v806 = vadd.f32 %v715, %v748
  %v807 = vadd.f32 %v716, %v752
  %v808 = vadd.f32 %v717, %v751
  %v809 = vadd.f32 %v718, %v755
  %v810 = vadd.f32 %v719, %v754
  %v811 = vadd.f32 %v720, %v758
  %v812 = vadd.f32 %v721, %v757
  %v813 = vadd.f32 %v722, %v761
  %v814 = vadd.f32 %v723, %v760
  %v815 = vadd.f32 %v724, %v764
  %v816 = vadd.f32 %v725, %v763
  %v817 = vsub.f32 0.0, %v460
  %v818 = vsub.f32 0.0, %v461
  %v819 = vsub.f32 0.0, %v462
  %v820 = vsub.f32 0.0, %v463
  %v821 = vsub.f32 0.0, %v464
  %v822 = vsub.f32 0.0, %v465
  %v823 = vsub.f32 0.0, %v466
  %v824 = vsub.f32 0.0, %v467
  %v825 = vsub.f32 0.0, %v468
  %v826 = vsub.f32 0.0, %v469
  %v827 = vsub.f32 0.0, %v470
  %v828 = vsub.f32 0.0, %v471
  %v829 = vsub.f32 0.0, %v472
  %v830 = vsub.f32 0.0, %v473
  %v831 = vsub.f32 0.0, %v474
  %v832 = vsub.f32 0.0, %v475
  %v833 = vsub.f32 0.0, %v476
  %v834 = vsub.f32 0.0, %v477
  %v835 = vsub.f32 0.0, %v478
  %v836 = vsub.f32 0.0, %v479
  %v837 = vsub.f32 0.0, %v480
  %v838 = vsub.f32 0.0, %v481
  %v839 = vsub.f32 0.0, %v482
  %v840 = vsub.f32 0.0, %v483
  %v841 = vsub.f32 0.0, %v484
  %v842 = vsub.f32 0.0, %v485
  %v843 = vsub.f32 %v817, %v462
  %v844 = vsub.f32 %v818, %v463
  %v845 = vsub.f32 %v819, %v464
  %v846 = vsub.f32 %v820, %v465
  %v847 = vsub.f32 %v821, %v466
  %v848 = vsub.f32 %v822, %v467
  %v849 = vsub.f32 %v823, %v468
  %v850 = vsub.f32 %v824, %v469
  %v851 = vsub.f32 %v825, %v470
  %v852 = vsub.f32 %v826, %v471
  %v853 = vsub.f32 %v827, %v472
  %v854 = vsub.f32 %v828, %v473
  %v855 = vsub.f32 %v829, %v474
  %v856 = vsub.f32 %v830, %v475
  %v857 = vsub.f32 %v831, %v476
  %v858 = vsub.f32 %v832, %v477
  %v859 = vsub.f32 %v833, %v478
  %v860 = vsub.f32 %v834, %v479
  %v861 = vsub.f32 %v835, %v480
  %v862 = vsub.f32 %v836, %v481
  %v863 = vsub.f32 %v837, %v482
  %v864 = vsub.f32 %v838, %v483
  %v865 = vsub.f32 %v839, %v484
  %v866 = vsub.f32 %v840, %v485
  %v867 = vsub.f32 %v841, %v486
  %v868 = vsub.f32 %v842, %v487
  %v869 = vadd.f32 %v843, %v464
  %v870 = vadd.f32 %v844, %v465
  %v871 = vadd.f32 %v845, %v466
  %v872 = vadd.f32 %v846, %v467
  %v873 = vadd.f32 %v847, %v468
  %v874 = vadd.f32 %v848, %v469
  %v875 = vadd.f32 %v849, %v470
  %v876 = vadd.f32 %v850, %v471
  %v877 = vadd.f32 %v851, %v472
  %v878 = vadd.f32 %v852, %v473
  %v879 = vadd.f32 %v853, %v474
  %v880 = vadd.f32 %v854, %v475
  %v881 = vadd.f32 %v855, %v476
  %v882 = vadd.f32 %v856, %v477
  %v883 = vadd.f32 %v857, %v478
  %v884 = vadd.f32 %v858, %v479
  %v885 = vadd.f32 %v859, %v480
  %v886 = vadd.f32 %v860, %v481
  %v887 = vadd.f32 %v861, %v482
  %v888 = vadd.f32 %v862, %v483
  %v889 = vadd.f32 %v863, %v484
  %v890 = vadd.f32 %v864, %v485
  %v891 = vadd.f32 %v865, %v486
  %v892 = vadd.f32 %v866, %v487
  %v893 = vadd.f32 %v867, %v488
  %v894 = vadd.f32 %v868, %v489
  %v895 = vadd.f32 %v869, %v466
  %v896 = vadd.f32 %v870, %v467
  %v897 = vadd.f32 %v871, %v468
  %v898 = vadd.f32 %v872, %v469
  %v899 = vadd.f32 %v873, %v470
  %v900 = vadd.f32 %v874, %v471
  %v901 = vadd.f32 %v875, %v472
  %v902 = vadd.f32 %v876, %v473
  %v903 = vadd.f32 %v877, %v474
  %v904 = vadd.f32 %v878, %v475
  %v905 = vadd.f32 %v879, %v476
  %v906 = vadd.f32 %v880, %v477
  %v907 = vadd.f32 %v881, %v478
  %v908 = vadd.f32 %v882, %v479
  %v909 = vadd.f32 %v883, %v480
  %v910 = vadd.f32 %v884, %v481
  %v911 = vadd.f32 %v885, %v482
  %v912 = vadd.f32 %v886, %v483
  %v913 = vadd.f32 %v887, %v484
  %v914 = vadd.f32 %v888, %v485
  %v915 = vadd.f32 %v889, %v486
  %v916 = vadd.f32 %v890, %v487
  %v917 = vadd.f32 %v891, %v488
  %v918 = vadd.f32 %v892, %v489
  %v919 = vadd.f32 %v893, %v490
  %v920 = vadd.f32 %v894, %v491
  %v921 = vsub.f32 0.0, %v791
  %v922 = vsub.f32 0.0, %v792
  %v923 = vsub.f32 0.0, %v793
  %v924 = vsub.f32 0.0, %v794
  %v925 = vsub.f32 0.0, %v795
  %v926 = vsub.f32 0.0, %v796
  %v927 = vsub.f32 0.0, %v797
  %v928 = vsub.f32 0.0, %v798
  %v929 = vsub.f32 0.0, %v799
  %v930 = vsub.f32 0.0, %v800
  %v931 = vsub.f32 0.0, %v801
  %v932 = vsub.f32 0.0, %v802
  %v933 = vsub.f32 0.0, %v803
  %v934 = vsub.f32 0.0, %v804
  %v935 = vsub.f32 0.0, %v805
  %v936 = vsub.f32 0.0, %v806
  %v937 = vsub.f32 0.0, %v807
  %v938 = vsub.f32 0.0, %v808
  %v939 = vsub.f32 0.0, %v809
  %v940 = vsub.f32 0.0, %v810
  %v941 = vsub.f32 0.0, %v811
  %v942 = vsub.f32 0.0, %v812
  %v943 = vsub.f32 0.0, %v813
  %v944 = vsub.f32 0.0, %v814
  %v945 = vsub.f32 0.0, %v815
  %v946 = vsub.f32 0.0, %v816
  %v947 = vsub.f32 0.0, %v895
  %v948 = vsub.f32 0.0, %v896
  %v949 = vsub.f32 0.0, %v897
  %v950 = vsub.f32 0.0, %v898
  %v951 = vsub.f32 0.0, %v899
  %v952 = vsub.f32 0.0, %v900
  %v953 = vsub.f32 0.0, %v901
  %v954 = vsub.f32 0.0, %v902
  %v955 = vsub.f32 0.0, %v903
  %v956 = vsub.f32 0.0, %v904
  %v957 = vsub.f32 0.0, %v905
  %v958 = vsub.f32 0.0, %v906
  %v959 = vsub.f32 0.0, %v907
  %v960 = vsub.f32 0.0, %v908
  %v961 = vsub.f32 0.0, %v909
  %v962 = vsub.f32 0.0, %v910
  %v963 = vsub.f32 0.0, %v911
  %v964 = vsub.f32 0.0, %v912
  %v965 = vsub.f32 0.0, %v913
  %v966 = vsub.f32 0.0, %v914
  %v967 = vsub.f32 0.0, %v915
  %v968 = vsub.f32 0.0, %v916
  %v969 = vsub.f32 0.0, %v917
  %v970 = vsub.f32 0.0, %v918
  %v971 = vsub.f32 0.0, %v919
  %v972 = vsub.f32 0.0, %v920
  %vm973 = vcmask 15360
  %974 = vst.msk [vmem:[%s1] sm:$0xff] %vm973, %v791
  %vm975 = vcmask 12288
  %976 = vst.msk [vmem:[%s1 + $0x8] sm:$0x1f] %vm975, %v792
  %977 = vst.msk [vmem:[%s1 + $0x10] sm:$0xff] %vm973, %v793
  %978 = vst.msk [vmem:[%s1 + $0x18] sm:$0x1f] %vm975, %v794
  %979 = vst.msk [vmem:[%s1 + $0x20] sm:$0xff] %vm973, %v795
  %980 = vst.msk [vmem:[%s1 + $0x28] sm:$0x1f] %vm975, %v796
  %981 = vst.msk [vmem:[%s1 + $0x30] sm:$0xff] %vm973, %v797
  %982 = vst.msk [vmem:[%s1 + $0x38] sm:$0x1f] %vm975, %v798
  %983 = vst.msk [vmem:[%s1 + $0x40] sm:$0xff] %vm973, %v799
  %984 = vst.msk [vmem:[%s1 + $0x48] sm:$0x1f] %vm975, %v800
  %985 = vst.msk [vmem:[%s1 + $0x50] sm:$0xff] %vm973, %v801
  %986 = vst.msk [vmem:[%s1 + $0x58] sm:$0x1f] %vm975, %v802
  %987 = vst.msk [vmem:[%s1 + $0x60] sm:$0xff] %vm973, %v803
  %988 = vst.msk [vmem:[%s1 + $0x68] sm:$0x1f] %vm975, %v804
  %989 = vst.msk [vmem:[%s1 + $0x70] sm:$0xff] %vm973, %v805
  %990 = vst.msk [vmem:[%s1 + $0x78] sm:$0x1f] %vm975, %v806
  %991 = vst.msk [vmem:[%s1 + $0x80] sm:$0xff] %vm973, %v807
  %992 = vst.msk [vmem:[%s1 + $0x88] sm:$0x1f] %vm975, %v808
  %993 = vst.msk [vmem:[%s1 + $0x90] sm:$0xff] %vm973, %v809
  %994 = vst.msk [vmem:[%s1 + $0x98] sm:$0x1f] %vm975, %v810
  %995 = vst.msk [vmem:[%s1 + $0xa0] sm:$0xff] %vm973, %v811
  %996 = vst.msk [vmem:[%s1 + $0xa8] sm:$0x1f] %vm975, %v812
  %997 = vst.msk [vmem:[%s1 + $0xb0] sm:$0xff] %vm973, %v813
  %998 = vst.msk [vmem:[%s1 + $0xb8] sm:$0x1f] %vm975, %v814
  %999 = vst.msk [vmem:[%s1 + $0xc0] sm:$0xff] %vm973, %v815
  %1000 = vst.msk [vmem:[%s1 + $0xc8] sm:$0x1f] %vm975, %v816
  %v1001 = vmax.f32 %v791, 0.0
  %v1002 = vmax.f32 %v792, 0.0
  %v1003 = vmax.f32 %v793, 0.0
  %v1004 = vmax.f32 %v794, 0.0
  %v1005 = vmax.f32 %v795, 0.0
  %v1006 = vmax.f32 %v796, 0.0
  %v1007 = vmax.f32 %v797, 0.0
  %v1008 = vmax.f32 %v798, 0.0
  %v1009 = vmax.f32 %v799, 0.0
  %v1010 = vmax.f32 %v800, 0.0
  %v1011 = vmax.f32 %v801, 0.0
  %v1012 = vmax.f32 %v802, 0.0
  %v1013 = vmax.f32 %v803, 0.0
  %v1014 = vmax.f32 %v804, 0.0
  %v1015 = vmax.f32 %v805, 0.0
  %v1016 = vmax.f32 %v806, 0.0
  %v1017 = vmax.f32 %v807, 0.0
  %v1018 = vmax.f32 %v808, 0.0
  %v1019 = vmax.f32 %v809, 0.0
  %v1020 = vmax.f32 %v810, 0.0
  %v1021 = vmax.f32 %v811, 0.0
  %v1022 = vmax.f32 %v812, 0.0
  %v1023 = vmax.f32 %v813, 0.0
  %v1024 = vmax.f32 %v814, 0.0
  %v1025 = vmax.f32 %v815, 0.0
  %v1026 = vmax.f32 %v816, 0.0
  %1027 = vst.msk [vmem:[%s2] sm:$0xff] %vm973, %v1001
  %1028 = vst.msk [vmem:[%s2 + $0x8] sm:$0x1f] %vm975, %v1002
  %1029 = vst.msk [vmem:[%s2 + $0x10] sm:$0xff] %vm973, %v1003
  %1030 = vst.msk [vmem:[%s2 + $0x18] sm:$0x1f] %vm975, %v1004
  %1031 = vst.msk [vmem:[%s2 + $0x20] sm:$0xff] %vm973, %v1005
  %1032 = vst.msk [vmem:[%s2 + $0x28] sm:$0x1f] %vm975, %v1006
  %1033 = vst.msk [vmem:[%s2 + $0x30] sm:$0xff] %vm973, %v1007
  %1034 = vst.msk [vmem:[%s2 + $0x38] sm:$0x1f] %vm975, %v1008
  %1035 = vst.msk [vmem:[%s2 + $0x40] sm:$0xff] %vm973, %v1009
  %1036 = vst.msk [vmem:[%s2 + $0x48] sm:$0x1f] %vm975, %v1010
  %1037 = vst.msk [vmem:[%s2 + $0x50] sm:$0xff] %vm973, %v1011
  %1038 = vst.msk [vmem:[%s2 + $0x58] sm:$0x1f] %vm975, %v1012
  %1039 = vst.msk [vmem:[%s2 + $0x60] sm:$0xff] %vm973, %v1013
  %1040 = vst.msk [vmem:[%s2 + $0x68] sm:$0x1f] %vm975, %v1014
  %1041 = vst.msk [vmem:[%s2 + $0x70] sm:$0xff] %vm973, %v1015
  %1042 = vst.msk [vmem:[%s2 + $0x78] sm:$0x1f] %vm975, %v1016
  %1043 = vst.msk [vmem:[%s2 + $0x80] sm:$0xff] %vm973, %v1017
  %1044 = vst.msk [vmem:[%s2 + $0x88] sm:$0x1f] %vm975, %v1018
  %1045 = vst.msk [vmem:[%s2 + $0x90] sm:$0xff] %vm973, %v1019
  %1046 = vst.msk [vmem:[%s2 + $0x98] sm:$0x1f] %vm975, %v1020
  %1047 = vst.msk [vmem:[%s2 + $0xa0] sm:$0xff] %vm973, %v1021
  %1048 = vst.msk [vmem:[%s2 + $0xa8] sm:$0x1f] %vm975, %v1022
  %1049 = vst.msk [vmem:[%s2 + $0xb0] sm:$0xff] %vm973, %v1023
  %1050 = vst.msk [vmem:[%s2 + $0xb8] sm:$0x1f] %vm975, %v1024
  %1051 = vst.msk [vmem:[%s2 + $0xc0] sm:$0xff] %vm973, %v1025
  %1052 = vst.msk [vmem:[%s2 + $0xc8] sm:$0x1f] %vm975, %v1026
  %v1053 = vmax.f32 %v1001, %v1003
  %v1054 = vmax.f32 %v1002, %v1004
  %v1055 = vmax.f32 %v1005, %v1007
  %v1056 = vmax.f32 %v1006, %v1008
  %v1057 = vmax.f32 %v1009, %v1011
  %v1058 = vmax.f32 %v1010, %v1012
  %v1059 = vmax.f32 %v1013, %v1015
  %v1060 = vmax.f32 %v1014, %v1016
  %v1061 = vmax.f32 %v1017, %v1019
  %v1062 = vmax.f32 %v1018, %v1020
  %v1063 = vmax.f32 %v1021, %v1023
  %v1064 = vmax.f32 %v1022, %v1024
  %v1077 = vrot.slane %v1053, 1
  %v1078 = vrot.slane %v1054, 1
  %v1079 = vsel %vm153, %v1077, %v1078
  %v1080 = vrot.slane %v1055, 1
  %v1081 = vrot.slane %v1056, 1
  %v1082 = vsel %vm153, %v1080, %v1081
  %v1083 = vrot.slane %v1057, 1
  %v1084 = vrot.slane %v1058, 1
  %v1085 = vsel %vm153, %v1083, %v1084
  %v1086 = vrot.slane %v1059, 1
  %v1087 = vrot.slane %v1060, 1
  %v1088 = vsel %vm153, %v1086, %v1087
  %v1089 = vrot.slane %v1061, 1
  %v1090 = vrot.slane %v1062, 1
  %v1091 = vsel %vm153, %v1089, %v1090
  %v1092 = vrot.slane %v1063, 1
  %v1093 = vrot.slane %v1064, 1
  %v1094 = vsel %vm153, %v1092, %v1093
  %v1107 = vmax.f32 %v1053, %v1079
  %v1108 = vmax.f32 %v1054, %v1078
  %v1109 = vmax.f32 %v1055, %v1082
  %v1110 = vmax.f32 %v1056, %v1081
  %v1111 = vmax.f32 %v1057, %v1085
  %v1112 = vmax.f32 %v1058, %v1084
  %v1113 = vmax.f32 %v1059, %v1088
  %v1114 = vmax.f32 %v1060, %v1087
  %v1115 = vmax.f32 %v1061, %v1091
  %v1116 = vmax.f32 %v1062, %v1090
  %v1117 = vmax.f32 %v1063, %v1094
  %v1118 = vmax.f32 %v1064, %v1093
  %1119 = vst.msk [vmem:[%s3] sm:$0xff] %vm973, %v1107
  %vm1120 = vcmask 11264
  %1121 = vst.msk [vmem:[%s3 + $0x8] sm:$0xf] %vm1120, %v1108
  %1122 = vst.msk [vmem:[%s3 + $0x10] sm:$0xff] %vm973, %v1109
  %1123 = vst.msk [vmem:[%s3 + $0x18] sm:$0xf] %vm1120, %v1110
  %1124 = vst.msk [vmem:[%s3 + $0x20] sm:$0xff] %vm973, %v1111
  %1125 = vst.msk [vmem:[%s3 + $0x28] sm:$0xf] %vm1120, %v1112
  %1126 = vst.msk [vmem:[%s3 + $0x30] sm:$0xff] %vm973, %v1113
  %1127 = vst.msk [vmem:[%s3 + $0x38] sm:$0xf] %vm1120, %v1114
  %1128 = vst.msk [vmem:[%s3 + $0x40] sm:$0xff] %vm973, %v1115
  %1129 = vst.msk [vmem:[%s3 + $0x48] sm:$0xf] %vm1120, %v1116
  %1130 = vst.msk [vmem:[%s3 + $0x50] sm:$0xff] %vm973, %v1117
  %1131 = vst.msk [vmem:[%s3 + $0x58] sm:$0xf] %vm1120, %v1118
  %s1132 = scalar_lea.vmem %s1, 208
  %1133 = vst.msk [vmem:[%s1132] sm:$0xff] %vm973, %v921
  %1134 = vst.msk [vmem:[%s1132 + $0x8] sm:$0x1f] %vm975, %v922
  %1135 = vst.msk [vmem:[%s1132 + $0x10] sm:$0xff] %vm973, %v923
  %1136 = vst.msk [vmem:[%s1132 + $0x18] sm:$0x1f] %vm975, %v924
  %1137 = vst.msk [vmem:[%s1132 + $0x20] sm:$0xff] %vm973, %v925
  %1138 = vst.msk [vmem:[%s1132 + $0x28] sm:$0x1f] %vm975, %v926
  %1139 = vst.msk [vmem:[%s1132 + $0x30] sm:$0xff] %vm973, %v927
  %1140 = vst.msk [vmem:[%s1132 + $0x38] sm:$0x1f] %vm975, %v928
  %1141 = vst.msk [vmem:[%s1132 + $0x40] sm:$0xff] %vm973, %v929
  %1142 = vst.msk [vmem:[%s1132 + $0x48] sm:$0x1f] %vm975, %v930
  %1143 = vst.msk [vmem:[%s1132 + $0x50] sm:$0xff] %vm973, %v931
  %1144 = vst.msk [vmem:[%s1132 + $0x58] sm:$0x1f] %vm975, %v932
  %1145 = vst.msk [vmem:[%s1132 + $0x60] sm:$0xff] %vm973, %v933
  %1146 = vst.msk [vmem:[%s1132 + $0x68] sm:$0x1f] %vm975, %v934
  %1147 = vst.msk [vmem:[%s1132 + $0x70] sm:$0xff] %vm973, %v935
  %1148 = vst.msk [vmem:[%s1132 + $0x78] sm:$0x1f] %vm975, %v936
  %1149 = vst.msk [vmem:[%s1132 + $0x80] sm:$0xff] %vm973, %v937
  %1150 = vst.msk [vmem:[%s1132 + $0x88] sm:$0x1f] %vm975, %v938
  %1151 = vst.msk [vmem:[%s1132 + $0x90] sm:$0xff] %vm973, %v939
  %1152 = vst.msk [vmem:[%s1132 + $0x98] sm:$0x1f] %vm975, %v940
  %1153 = vst.msk [vmem:[%s1132 + $0xa0] sm:$0xff] %vm973, %v941
  %1154 = vst.msk [vmem:[%s1132 + $0xa8] sm:$0x1f] %vm975, %v942
  %1155 = vst.msk [vmem:[%s1132 + $0xb0] sm:$0xff] %vm973, %v943
  %1156 = vst.msk [vmem:[%s1132 + $0xb8] sm:$0x1f] %vm975, %v944
  %1157 = vst.msk [vmem:[%s1132 + $0xc0] sm:$0xff] %vm973, %v945
  %1158 = vst.msk [vmem:[%s1132 + $0xc8] sm:$0x1f] %vm975, %v946
  %v1159 = vmax.f32 %v921, 0.0
  %v1160 = vmax.f32 %v922, 0.0
  %v1161 = vmax.f32 %v923, 0.0
  %v1162 = vmax.f32 %v924, 0.0
  %v1163 = vmax.f32 %v925, 0.0
  %v1164 = vmax.f32 %v926, 0.0
  %v1165 = vmax.f32 %v927, 0.0
  %v1166 = vmax.f32 %v928, 0.0
  %v1167 = vmax.f32 %v929, 0.0
  %v1168 = vmax.f32 %v930, 0.0
  %v1169 = vmax.f32 %v931, 0.0
  %v1170 = vmax.f32 %v932, 0.0
  %v1171 = vmax.f32 %v933, 0.0
  %v1172 = vmax.f32 %v934, 0.0
  %v1173 = vmax.f32 %v935, 0.0
  %v1174 = vmax.f32 %v936, 0.0
  %v1175 = vmax.f32 %v937, 0.0
  %v1176 = vmax.f32 %v938, 0.0
  %v1177 = vmax.f32 %v939, 0.0
  %v1178 = vmax.f32 %v940, 0.0
  %v1179 = vmax.f32 %v941, 0.0
  %v1180 = vmax.f32 %v942, 0.0
  %v1181 = vmax.f32 %v943, 0.0
  %v1182 = vmax.f32 %v944, 0.0
  %v1183 = vmax.f32 %v945, 0.0
  %v1184 = vmax.f32 %v946, 0.0
  %s1185 = scalar_lea.vmem %s2, 208
  %1186 = vst.msk [vmem:[%s1185] sm:$0xff] %vm973, %v1159
  %1187 = vst.msk [vmem:[%s1185 + $0x8] sm:$0x1f] %vm975, %v1160
  %1188 = vst.msk [vmem:[%s1185 + $0x10] sm:$0xff] %vm973, %v1161
  %1189 = vst.msk [vmem:[%s1185 + $0x18] sm:$0x1f] %vm975, %v1162
  %1190 = vst.msk [vmem:[%s1185 + $0x20] sm:$0xff] %vm973, %v1163
  %1191 = vst.msk [vmem:[%s1185 + $0x28] sm:$0x1f] %vm975, %v1164
  %1192 = vst.msk [vmem:[%s1185 + $0x30] sm:$0xff] %vm973, %v1165
  %1193 = vst.msk [vmem:[%s1185 + $0x38] sm:$0x1f] %vm975, %v1166
  %1194 = vst.msk [vmem:[%s1185 + $0x40] sm:$0xff] %vm973, %v1167
  %1195 = vst.msk [vmem:[%s1185 + $0x48] sm:$0x1f] %vm975, %v1168
  %1196 = vst.msk [vmem:[%s1185 + $0x50] sm:$0xff] %vm973, %v1169
  %1197 = vst.msk [vmem:[%s1185 + $0x58] sm:$0x1f] %vm975, %v1170
  %1198 = vst.msk [vmem:[%s1185 + $0x60] sm:$0xff] %vm973, %v1171
  %1199 = vst.msk [vmem:[%s1185 + $0x68] sm:$0x1f] %vm975, %v1172
  %1200 = vst.msk [vmem:[%s1185 + $0x70] sm:$0xff] %vm973, %v1173
  %1201 = vst.msk [vmem:[%s1185 + $0x78] sm:$0x1f] %vm975, %v1174
  %1202 = vst.msk [vmem:[%s1185 + $0x80] sm:$0xff] %vm973, %v1175
  %1203 = vst.msk [vmem:[%s1185 + $0x88] sm:$0x1f] %vm975, %v1176
  %1204 = vst.msk [vmem:[%s1185 + $0x90] sm:$0xff] %vm973, %v1177
  %1205 = vst.msk [vmem:[%s1185 + $0x98] sm:$0x1f] %vm975, %v1178
  %1206 = vst.msk [vmem:[%s1185 + $0xa0] sm:$0xff] %vm973, %v1179
  %1207 = vst.msk [vmem:[%s1185 + $0xa8] sm:$0x1f] %vm975, %v1180
  %1208 = vst.msk [vmem:[%s1185 + $0xb0] sm:$0xff] %vm973, %v1181
  %1209 = vst.msk [vmem:[%s1185 + $0xb8] sm:$0x1f] %vm975, %v1182
  %1210 = vst.msk [vmem:[%s1185 + $0xc0] sm:$0xff] %vm973, %v1183
  %1211 = vst.msk [vmem:[%s1185 + $0xc8] sm:$0x1f] %vm975, %v1184
  %v1212 = vmax.f32 %v1159, %v1161
  %v1213 = vmax.f32 %v1160, %v1162
  %v1214 = vmax.f32 %v1163, %v1165
  %v1215 = vmax.f32 %v1164, %v1166
  %v1216 = vmax.f32 %v1167, %v1169
  %v1217 = vmax.f32 %v1168, %v1170
  %v1218 = vmax.f32 %v1171, %v1173
  %v1219 = vmax.f32 %v1172, %v1174
  %v1220 = vmax.f32 %v1175, %v1177
  %v1221 = vmax.f32 %v1176, %v1178
  %v1222 = vmax.f32 %v1179, %v1181
  %v1223 = vmax.f32 %v1180, %v1182
  %v1236 = vrot.slane %v1212, 1
  %v1237 = vrot.slane %v1213, 1
  %v1238 = vsel %vm153, %v1236, %v1237
  %v1239 = vrot.slane %v1214, 1
  %v1240 = vrot.slane %v1215, 1
  %v1241 = vsel %vm153, %v1239, %v1240
  %v1242 = vrot.slane %v1216, 1
  %v1243 = vrot.slane %v1217, 1
  %v1244 = vsel %vm153, %v1242, %v1243
  %v1245 = vrot.slane %v1218, 1
  %v1246 = vrot.slane %v1219, 1
  %v1247 = vsel %vm153, %v1245, %v1246
  %v1248 = vrot.slane %v1220, 1
  %v1249 = vrot.slane %v1221, 1
  %v1250 = vsel %vm153, %v1248, %v1249
  %v1251 = vrot.slane %v1222, 1
  %v1252 = vrot.slane %v1223, 1
  %v1253 = vsel %vm153, %v1251, %v1252
  %v1266 = vmax.f32 %v1212, %v1238
  %v1267 = vmax.f32 %v1213, %v1237
  %v1268 = vmax.f32 %v1214, %v1241
  %v1269 = vmax.f32 %v1215, %v1240
  %v1270 = vmax.f32 %v1216, %v1244
  %v1271 = vmax.f32 %v1217, %v1243
  %v1272 = vmax.f32 %v1218, %v1247
  %v1273 = vmax.f32 %v1219, %v1246
  %v1274 = vmax.f32 %v1220, %v1250
  %v1275 = vmax.f32 %v1221, %v1249
  %v1276 = vmax.f32 %v1222, %v1253
  %v1277 = vmax.f32 %v1223, %v1252
  %s1278 = scalar_lea.vmem %s3, 96
  %1279 = vst.msk [vmem:[%s1278] sm:$0xff] %vm973, %v1266
  %1280 = vst.msk [vmem:[%s1278 + $0x8] sm:$0xf] %vm1120, %v1267
  %1281 = vst.msk [vmem:[%s1278 + $0x10] sm:$0xff] %vm973, %v1268
  %1282 = vst.msk [vmem:[%s1278 + $0x18] sm:$0xf] %vm1120, %v1269
  %1283 = vst.msk [vmem:[%s1278 + $0x20] sm:$0xff] %vm973, %v1270
  %1284 = vst.msk [vmem:[%s1278 + $0x28] sm:$0xf] %vm1120, %v1271
  %1285 = vst.msk [vmem:[%s1278 + $0x30] sm:$0xff] %vm973, %v1272
  %1286 = vst.msk [vmem:[%s1278 + $0x38] sm:$0xf] %vm1120, %v1273
  %1287 = vst.msk [vmem:[%s1278 + $0x40] sm:$0xff] %vm973, %v1274
  %1288 = vst.msk [vmem:[%s1278 + $0x48] sm:$0xf] %vm1120, %v1275
  %1289 = vst.msk [vmem:[%s1278 + $0x50] sm:$0xff] %vm973, %v1276
  %1290 = vst.msk [vmem:[%s1278 + $0x58] sm:$0xf] %vm1120, %v1277
  %s1291 = scalar_lea.vmem %s1, 416
  %1292 = vst.msk [vmem:[%s1291] sm:$0xff] %vm973, %v895
  %1293 = vst.msk [vmem:[%s1291 + $0x8] sm:$0x1f] %vm975, %v896
  %1294 = vst.msk [vmem:[%s1291 + $0x10] sm:$0xff] %vm973, %v897
  %1295 = vst.msk [vmem:[%s1291 + $0x18] sm:$0x1f] %vm975, %v898
  %1296 = vst.msk [vmem:[%s1291 + $0x20] sm:$0xff] %vm973, %v899
  %1297 = vst.msk [vmem:[%s1291 + $0x28] sm:$0x1f] %vm975, %v900
  %1298 = vst.msk [vmem:[%s1291 + $0x30] sm:$0xff] %vm973, %v901
  %1299 = vst.msk [vmem:[%s1291 + $0x38] sm:$0x1f] %vm975, %v902
  %1300 = vst.msk [vmem:[%s1291 + $0x40] sm:$0xff] %vm973, %v903
  %1301 = vst.msk [vmem:[%s1291 + $0x48] sm:$0x1f] %vm975, %v904
  %1302 = vst.msk [vmem:[%s1291 + $0x50] sm:$0xff] %vm973, %v905
  %1303 = vst.msk [vmem:[%s1291 + $0x58] sm:$0x1f] %vm975, %v906
  %1304 = vst.msk [vmem:[%s1291 + $0x60] sm:$0xff] %vm973, %v907
  %1305 = vst.msk [vmem:[%s1291 + $0x68] sm:$0x1f] %vm975, %v908
  %1306 = vst.msk [vmem:[%s1291 + $0x70] sm:$0xff] %vm973, %v909
  %1307 = vst.msk [vmem:[%s1291 + $0x78] sm:$0x1f] %vm975, %v910
  %1308 = vst.msk [vmem:[%s1291 + $0x80] sm:$0xff] %vm973, %v911
  %1309 = vst.msk [vmem:[%s1291 + $0x88] sm:$0x1f] %vm975, %v912
  %1310 = vst.msk [vmem:[%s1291 + $0x90] sm:$0xff] %vm973, %v913
  %1311 = vst.msk [vmem:[%s1291 + $0x98] sm:$0x1f] %vm975, %v914
  %1312 = vst.msk [vmem:[%s1291 + $0xa0] sm:$0xff] %vm973, %v915
  %1313 = vst.msk [vmem:[%s1291 + $0xa8] sm:$0x1f] %vm975, %v916
  %1314 = vst.msk [vmem:[%s1291 + $0xb0] sm:$0xff] %vm973, %v917
  %1315 = vst.msk [vmem:[%s1291 + $0xb8] sm:$0x1f] %vm975, %v918
  %1316 = vst.msk [vmem:[%s1291 + $0xc0] sm:$0xff] %vm973, %v919
  %1317 = vst.msk [vmem:[%s1291 + $0xc8] sm:$0x1f] %vm975, %v920
  %v1318 = vmax.f32 %v895, 0.0
  %v1319 = vmax.f32 %v896, 0.0
  %v1320 = vmax.f32 %v897, 0.0
  %v1321 = vmax.f32 %v898, 0.0
  %v1322 = vmax.f32 %v899, 0.0
  %v1323 = vmax.f32 %v900, 0.0
  %v1324 = vmax.f32 %v901, 0.0
  %v1325 = vmax.f32 %v902, 0.0
  %v1326 = vmax.f32 %v903, 0.0
  %v1327 = vmax.f32 %v904, 0.0
  %v1328 = vmax.f32 %v905, 0.0
  %v1329 = vmax.f32 %v906, 0.0
  %v1330 = vmax.f32 %v907, 0.0
  %v1331 = vmax.f32 %v908, 0.0
  %v1332 = vmax.f32 %v909, 0.0
  %v1333 = vmax.f32 %v910, 0.0
  %v1334 = vmax.f32 %v911, 0.0
  %v1335 = vmax.f32 %v912, 0.0
  %v1336 = vmax.f32 %v913, 0.0
  %v1337 = vmax.f32 %v914, 0.0
  %v1338 = vmax.f32 %v915, 0.0
  %v1339 = vmax.f32 %v916, 0.0
  %v1340 = vmax.f32 %v917, 0.0
  %v1341 = vmax.f32 %v918, 0.0
  %v1342 = vmax.f32 %v919, 0.0
  %v1343 = vmax.f32 %v920, 0.0
  %s1344 = scalar_lea.vmem %s2, 416
  %1345 = vst.msk [vmem:[%s1344] sm:$0xff] %vm973, %v1318
  %1346 = vst.msk [vmem:[%s1344 + $0x8] sm:$0x1f] %vm975, %v1319
  %1347 = vst.msk [vmem:[%s1344 + $0x10] sm:$0xff] %vm973, %v1320
  %1348 = vst.msk [vmem:[%s1344 + $0x18] sm:$0x1f] %vm975, %v1321
  %1349 = vst.msk [vmem:[%s1344 + $0x20] sm:$0xff] %vm973, %v1322
  %1350 = vst.msk [vmem:[%s1344 + $0x28] sm:$0x1f] %vm975, %v1323
  %1351 = vst.msk [vmem:[%s1344 + $0x30] sm:$0xff] %vm973, %v1324
  %1352 = vst.msk [vmem:[%s1344 + $0x38] sm:$0x1f] %vm975, %v1325
  %1353 = vst.msk [vmem:[%s1344 + $0x40] sm:$0xff] %vm973, %v1326
  %1354 = vst.msk [vmem:[%s1344 + $0x48] sm:$0x1f] %vm975, %v1327
  %1355 = vst.msk [vmem:[%s1344 + $0x50] sm:$0xff] %vm973, %v1328
  %1356 = vst.msk [vmem:[%s1344 + $0x58] sm:$0x1f] %vm975, %v1329
  %1357 = vst.msk [vmem:[%s1344 + $0x60] sm:$0xff] %vm973, %v1330
  %1358 = vst.msk [vmem:[%s1344 + $0x68] sm:$0x1f] %vm975, %v1331
  %1359 = vst.msk [vmem:[%s1344 + $0x70] sm:$0xff] %vm973, %v1332
  %1360 = vst.msk [vmem:[%s1344 + $0x78] sm:$0x1f] %vm975, %v1333
  %1361 = vst.msk [vmem:[%s1344 + $0x80] sm:$0xff] %vm973, %v1334
  %1362 = vst.msk [vmem:[%s1344 + $0x88] sm:$0x1f] %vm975, %v1335
  %1363 = vst.msk [vmem:[%s1344 + $0x90] sm:$0xff] %vm973, %v1336
  %1364 = vst.msk [vmem:[%s1344 + $0x98] sm:$0x1f] %vm975, %v1337
  %1365 = vst.msk [vmem:[%s1344 + $0xa0] sm:$0xff] %vm973, %v1338
  %1366 = vst.msk [vmem:[%s1344 + $0xa8] sm:$0x1f] %vm975, %v1339
  %1367 = vst.msk [vmem:[%s1344 + $0xb0] sm:$0xff] %vm973, %v1340
  %1368 = vst.msk [vmem:[%s1344 + $0xb8] sm:$0x1f] %vm975, %v1341
  %1369 = vst.msk [vmem:[%s1344 + $0xc0] sm:$0xff] %vm973, %v1342
  %1370 = vst.msk [vmem:[%s1344 + $0xc8] sm:$0x1f] %vm975, %v1343
  %v1371 = vmax.f32 %v1318, %v1320
  %v1372 = vmax.f32 %v1319, %v1321
  %v1373 = vmax.f32 %v1322, %v1324
  %v1374 = vmax.f32 %v1323, %v1325
  %v1375 = vmax.f32 %v1326, %v1328
  %v1376 = vmax.f32 %v1327, %v1329
  %v1377 = vmax.f32 %v1330, %v1332
  %v1378 = vmax.f32 %v1331, %v1333
  %v1379 = vmax.f32 %v1334, %v1336
  %v1380 = vmax.f32 %v1335, %v1337
  %v1381 = vmax.f32 %v1338, %v1340
  %v1382 = vmax.f32 %v1339, %v1341
  %v1395 = vrot.slane %v1371, 1
  %v1396 = vrot.slane %v1372, 1
  %v1397 = vsel %vm153, %v1395, %v1396
  %v1398 = vrot.slane %v1373, 1
  %v1399 = vrot.slane %v1374, 1
  %v1400 = vsel %vm153, %v1398, %v1399
  %v1401 = vrot.slane %v1375, 1
  %v1402 = vrot.slane %v1376, 1
  %v1403 = vsel %vm153, %v1401, %v1402
  %v1404 = vrot.slane %v1377, 1
  %v1405 = vrot.slane %v1378, 1
  %v1406 = vsel %vm153, %v1404, %v1405
  %v1407 = vrot.slane %v1379, 1
  %v1408 = vrot.slane %v1380, 1
  %v1409 = vsel %vm153, %v1407, %v1408
  %v1410 = vrot.slane %v1381, 1
  %v1411 = vrot.slane %v1382, 1
  %v1412 = vsel %vm153, %v1410, %v1411
  %v1425 = vmax.f32 %v1371, %v1397
  %v1426 = vmax.f32 %v1372, %v1396
  %v1427 = vmax.f32 %v1373, %v1400
  %v1428 = vmax.f32 %v1374, %v1399
  %v1429 = vmax.f32 %v1375, %v1403
  %v1430 = vmax.f32 %v1376, %v1402
  %v1431 = vmax.f32 %v1377, %v1406
  %v1432 = vmax.f32 %v1378, %v1405
  %v1433 = vmax.f32 %v1379, %v1409
  %v1434 = vmax.f32 %v1380, %v1408
  %v1435 = vmax.f32 %v1381, %v1412
  %v1436 = vmax.f32 %v1382, %v1411
  %s1437 = scalar_lea.vmem %s3, 192
  %1438 = vst.msk [vmem:[%s1437] sm:$0xff] %vm973, %v1425
  %1439 = vst.msk [vmem:[%s1437 + $0x8] sm:$0xf] %vm1120, %v1426
  %1440 = vst.msk [vmem:[%s1437 + $0x10] sm:$0xff] %vm973, %v1427
  %1441 = vst.msk [vmem:[%s1437 + $0x18] sm:$0xf] %vm1120, %v1428
  %1442 = vst.msk [vmem:[%s1437 + $0x20] sm:$0xff] %vm973, %v1429
  %1443 = vst.msk [vmem:[%s1437 + $0x28] sm:$0xf] %vm1120, %v1430
  %1444 = vst.msk [vmem:[%s1437 + $0x30] sm:$0xff] %vm973, %v1431
  %1445 = vst.msk [vmem:[%s1437 + $0x38] sm:$0xf] %vm1120, %v1432
  %1446 = vst.msk [vmem:[%s1437 + $0x40] sm:$0xff] %vm973, %v1433
  %1447 = vst.msk [vmem:[%s1437 + $0x48] sm:$0xf] %vm1120, %v1434
  %1448 = vst.msk [vmem:[%s1437 + $0x50] sm:$0xff] %vm973, %v1435
  %1449 = vst.msk [vmem:[%s1437 + $0x58] sm:$0xf] %vm1120, %v1436
  %s1450 = scalar_lea.vmem %s1, 624
  %1451 = vst.msk [vmem:[%s1450] sm:$0xff] %vm973, %v947
  %1452 = vst.msk [vmem:[%s1450 + $0x8] sm:$0x1f] %vm975, %v948
  %1453 = vst.msk [vmem:[%s1450 + $0x10] sm:$0xff] %vm973, %v949
  %1454 = vst.msk [vmem:[%s1450 + $0x18] sm:$0x1f] %vm975, %v950
  %1455 = vst.msk [vmem:[%s1450 + $0x20] sm:$0xff] %vm973, %v951
  %1456 = vst.msk [vmem:[%s1450 + $0x28] sm:$0x1f] %vm975, %v952
  %1457 = vst.msk [vmem:[%s1450 + $0x30] sm:$0xff] %vm973, %v953
  %1458 = vst.msk [vmem:[%s1450 + $0x38] sm:$0x1f] %vm975, %v954
  %1459 = vst.msk [vmem:[%s1450 + $0x40] sm:$0xff] %vm973, %v955
  %1460 = vst.msk [vmem:[%s1450 + $0x48] sm:$0x1f] %vm975, %v956
  %1461 = vst.msk [vmem:[%s1450 + $0x50] sm:$0xff] %vm973, %v957
  %1462 = vst.msk [vmem:[%s1450 + $0x58] sm:$0x1f] %vm975, %v958
  %1463 = vst.msk [vmem:[%s1450 + $0x60] sm:$0xff] %vm973, %v959
  %1464 = vst.msk [vmem:[%s1450 + $0x68] sm:$0x1f] %vm975, %v960
  %1465 = vst.msk [vmem:[%s1450 + $0x70] sm:$0xff] %vm973, %v961
  %1466 = vst.msk [vmem:[%s1450 + $0x78] sm:$0x1f] %vm975, %v962
  %1467 = vst.msk [vmem:[%s1450 + $0x80] sm:$0xff] %vm973, %v963
  %1468 = vst.msk [vmem:[%s1450 + $0x88] sm:$0x1f] %vm975, %v964
  %1469 = vst.msk [vmem:[%s1450 + $0x90] sm:$0xff] %vm973, %v965
  %1470 = vst.msk [vmem:[%s1450 + $0x98] sm:$0x1f] %vm975, %v966
  %1471 = vst.msk [vmem:[%s1450 + $0xa0] sm:$0xff] %vm973, %v967
  %1472 = vst.msk [vmem:[%s1450 + $0xa8] sm:$0x1f] %vm975, %v968
  %1473 = vst.msk [vmem:[%s1450 + $0xb0] sm:$0xff] %vm973, %v969
  %1474 = vst.msk [vmem:[%s1450 + $0xb8] sm:$0x1f] %vm975, %v970
  %1475 = vst.msk [vmem:[%s1450 + $0xc0] sm:$0xff] %vm973, %v971
  %1476 = vst.msk [vmem:[%s1450 + $0xc8] sm:$0x1f] %vm975, %v972
  %v1477 = vmax.f32 %v947, 0.0
  %v1478 = vmax.f32 %v948, 0.0
  %v1479 = vmax.f32 %v949, 0.0
  %v1480 = vmax.f32 %v950, 0.0
  %v1481 = vmax.f32 %v951, 0.0
  %v1482 = vmax.f32 %v952, 0.0
  %v1483 = vmax.f32 %v953, 0.0
  %v1484 = vmax.f32 %v954, 0.0
  %v1485 = vmax.f32 %v955, 0.0
  %v1486 = vmax.f32 %v956, 0.0
  %v1487 = vmax.f32 %v957, 0.0
  %v1488 = vmax.f32 %v958, 0.0
  %v1489 = vmax.f32 %v959, 0.0
  %v1490 = vmax.f32 %v960, 0.0
  %v1491 = vmax.f32 %v961, 0.0
  %v1492 = vmax.f32 %v962, 0.0
  %v1493 = vmax.f32 %v963, 0.0
  %v1494 = vmax.f32 %v964, 0.0
  %v1495 = vmax.f32 %v965, 0.0
  %v1496 = vmax.f32 %v966, 0.0
  %v1497 = vmax.f32 %v967, 0.0
  %v1498 = vmax.f32 %v968, 0.0
  %v1499 = vmax.f32 %v969, 0.0
  %v1500 = vmax.f32 %v970, 0.0
  %v1501 = vmax.f32 %v971, 0.0
  %v1502 = vmax.f32 %v972, 0.0
  %s1503 = scalar_lea.vmem %s2, 624
  %1504 = vst.msk [vmem:[%s1503] sm:$0xff] %vm973, %v1477
  %1505 = vst.msk [vmem:[%s1503 + $0x8] sm:$0x1f] %vm975, %v1478
  %1506 = vst.msk [vmem:[%s1503 + $0x10] sm:$0xff] %vm973, %v1479
  %1507 = vst.msk [vmem:[%s1503 + $0x18] sm:$0x1f] %vm975, %v1480
  %1508 = vst.msk [vmem:[%s1503 + $0x20] sm:$0xff] %vm973, %v1481
  %1509 = vst.msk [vmem:[%s1503 + $0x28] sm:$0x1f] %vm975, %v1482
  %1510 = vst.msk [vmem:[%s1503 + $0x30] sm:$0xff] %vm973, %v1483
  %1511 = vst.msk [vmem:[%s1503 + $0x38] sm:$0x1f] %vm975, %v1484
  %1512 = vst.msk [vmem:[%s1503 + $0x40] sm:$0xff] %vm973, %v1485
  %1513 = vst.msk [vmem:[%s1503 + $0x48] sm:$0x1f] %vm975, %v1486
  %1514 = vst.msk [vmem:[%s1503 + $0x50] sm:$0xff] %vm973, %v1487
  %1515 = vst.msk [vmem:[%s1503 + $0x58] sm:$0x1f] %vm975, %v1488
  %1516 = vst.msk [vmem:[%s1503 + $0x60] sm:$0xff] %vm973, %v1489
  %1517 = vst.msk [vmem:[%s1503 + $0x68] sm:$0x1f] %vm975, %v1490
  %1518 = vst.msk [vmem:[%s1503 + $0x70] sm:$0xff] %vm973, %v1491
  %1519 = vst.msk [vmem:[%s1503 + $0x78] sm:$0x1f] %vm975, %v1492
  %1520 = vst.msk [vmem:[%s1503 + $0x80] sm:$0xff] %vm973, %v1493
  %1521 = vst.msk [vmem:[%s1503 + $0x88] sm:$0x1f] %vm975, %v1494
  %1522 = vst.msk [vmem:[%s1503 + $0x90] sm:$0xff] %vm973, %v1495
  %1523 = vst.msk [vmem:[%s1503 + $0x98] sm:$0x1f] %vm975, %v1496
  %1524 = vst.msk [vmem:[%s1503 + $0xa0] sm:$0xff] %vm973, %v1497
  %1525 = vst.msk [vmem:[%s1503 + $0xa8] sm:$0x1f] %vm975, %v1498
  %1526 = vst.msk [vmem:[%s1503 + $0xb0] sm:$0xff] %vm973, %v1499
  %1527 = vst.msk [vmem:[%s1503 + $0xb8] sm:$0x1f] %vm975, %v1500
  %1528 = vst.msk [vmem:[%s1503 + $0xc0] sm:$0xff] %vm973, %v1501
  %1529 = vst.msk [vmem:[%s1503 + $0xc8] sm:$0x1f] %vm975, %v1502
  %v1530 = vmax.f32 %v1477, %v1479
  %v1531 = vmax.f32 %v1478, %v1480
  %v1532 = vmax.f32 %v1481, %v1483
  %v1533 = vmax.f32 %v1482, %v1484
  %v1534 = vmax.f32 %v1485, %v1487
  %v1535 = vmax.f32 %v1486, %v1488
  %v1536 = vmax.f32 %v1489, %v1491
  %v1537 = vmax.f32 %v1490, %v1492
  %v1538 = vmax.f32 %v1493, %v1495
  %v1539 = vmax.f32 %v1494, %v1496
  %v1540 = vmax.f32 %v1497, %v1499
  %v1541 = vmax.f32 %v1498, %v1500
  %v1554 = vrot.slane %v1530, 1
  %v1555 = vrot.slane %v1531, 1
  %v1556 = vsel %vm153, %v1554, %v1555
  %v1557 = vrot.slane %v1532, 1
  %v1558 = vrot.slane %v1533, 1
  %v1559 = vsel %vm153, %v1557, %v1558
  %v1560 = vrot.slane %v1534, 1
  %v1561 = vrot.slane %v1535, 1
  %v1562 = vsel %vm153, %v1560, %v1561
  %v1563 = vrot.slane %v1536, 1
  %v1564 = vrot.slane %v1537, 1
  %v1565 = vsel %vm153, %v1563, %v1564
  %v1566 = vrot.slane %v1538, 1
  %v1567 = vrot.slane %v1539, 1
  %v1568 = vsel %vm153, %v1566, %v1567
  %v1569 = vrot.slane %v1540, 1
  %v1570 = vrot.slane %v1541, 1
  %v1571 = vsel %vm153, %v1569, %v1570
  %v1584 = vmax.f32 %v1530, %v1556
  %v1585 = vmax.f32 %v1531, %v1555
  %v1586 = vmax.f32 %v1532, %v1559
  %v1587 = vmax.f32 %v1533, %v1558
  %v1588 = vmax.f32 %v1534, %v1562
  %v1589 = vmax.f32 %v1535, %v1561
  %v1590 = vmax.f32 %v1536, %v1565
  %v1591 = vmax.f32 %v1537, %v1564
  %v1592 = vmax.f32 %v1538, %v1568
  %v1593 = vmax.f32 %v1539, %v1567
  %v1594 = vmax.f32 %v1540, %v1571
  %v1595 = vmax.f32 %v1541, %v1570
  %s1596 = scalar_lea.vmem %s3, 288
  %1597 = vst.msk [vmem:[%s1596] sm:$0xff] %vm973, %v1584
  %1598 = vst.msk [vmem:[%s1596 + $0x8] sm:$0xf] %vm1120, %v1585
  %1599 = vst.msk [vmem:[%s1596 + $0x10] sm:$0xff] %vm973, %v1586
  %1600 = vst.msk [vmem:[%s1596 + $0x18] sm:$0xf] %vm1120, %v1587
  %1601 = vst.msk [vmem:[%s1596 + $0x20] sm:$0xff] %vm973, %v1588
  %1602 = vst.msk [vmem:[%s1596 + $0x28] sm:$0xf] %vm1120, %v1589
  %1603 = vst.msk [vmem:[%s1596 + $0x30] sm:$0xff] %vm973, %v1590
  %1604 = vst.msk [vmem:[%s1596 + $0x38] sm:$0xf] %vm1120, %v1591
  %1605 = vst.msk [vmem:[%s1596 + $0x40] sm:$0xff] %vm973, %v1592
  %1606 = vst.msk [vmem:[%s1596 + $0x48] sm:$0xf] %vm1120, %v1593
  %1607 = vst.msk [vmem:[%s1596 + $0x50] sm:$0xff] %vm973, %v1594
  %1608 = vst.msk [vmem:[%s1596 + $0x58] sm:$0xf] %vm1120, %v1595
  // Predicated region
  $region6: #{net_forward.1} parent=0 // pred_check
    _
  $region7: #{net_forward.1} parent=0 // pred_check_branch
    %1610 = sbr.rel (0) target = $region9
  $region8: #{net_forward.1} parent=0 // pred_region
    _
  $region9: #{net_forward.1} parent=0 // pred_fallthru
    _
  // Predicated region
  $region10: #{net_forward.1} parent=0 // pred_check
    _
  $region11: #{net_forward.1} parent=0 // pred_check_branch
    %1612 = sbr.rel (0) target = $region13
  $region12: #{net_forward.1} parent=0 // pred_region
    _
  $region13: #{net_forward.1} parent=0 // pred_fallthru
    _
  // Predicated region
  $region14: #{net_forward.1} parent=0 // pred_check
    _
  $region15: #{net_forward.1} parent=0 // pred_check_branch
    %1614 = sbr.rel (0) target = $region17
  $region16: #{net_forward.1} parent=0 // pred_region
    _
  $region17: #{net_forward.1} parent=0 // pred_fallthru
    _
  // Predicated region
  $region18: #{net_forward.1} parent=0 // pred_check
    _
  $region19: #{net_forward.1} parent=0 // pred_check_branch
    %1616 = sbr.rel (0) target = $region21
  $region20: #{net_forward.1} parent=0 // pred_region
    _
  $region21: #{net_forward.1} parent=0 // pred_fallthru
    _
  // Predicated region
  $region22: #{net_forward.1} parent=0 // pred_check
    _
  $region23: #{net_forward.1} parent=0 // pred_check_branch
    %1618 = sbr.rel (0) target = $region25
  $region24: #{net_forward.1} parent=0 // pred_region
    _
  $region25: #{net_forward.1} parent=0 // pred_fallthru
    _
  // Predicated region
  $region26: #{net_forward.1} parent=0 // pred_check
    _
  $region27: #{net_forward.1} parent=0 // pred_check_branch
    %1620 = sbr.rel (0) target = $region29
  $region28: #{net_forward.1} parent=0 // pred_region
    _
  $region29: #{net_forward.1} parent=0 // pred_fallthru
    _

</llo_original>
